<compile_context>
chip_gen: v6e
topology: v6e:2x2x1
jax: 0.10.0
libtpu: 0.0.40
codegen_flags: <defaults>
</compile_context>

<pallas_src>
import functools

import jax
import jax.numpy as jnp
from jax import lax
from jax.experimental import pallas as pl
from jax.experimental.pallas import tpu as pltpu


def _round_up(x, m):
    return ((x + m - 1) // m) * m


def _dice_kernel(n_fg, s_blk, rows_valid, cols, defer,
                 t_ref, r1_ref, r2_ref, r3_ref, r4_ref,
                 out_ref, rs_acc, ts_acc, it_acc):
    """Accumulate per-class sums over spatial chunks; emit (1 - dice) at the end."""
    s = pl.program_id(1)
    n_s = pl.num_programs(1)

    # Zero the per-class accumulators at the first chunk of every batch item.
    @pl.when(s == 0)
    def _():
        rs_acc[...] = jnp.zeros_like(rs_acc)
        ts_acc[...] = jnp.zeros_like(ts_acc)
        it_acc[...] = jnp.zeros_like(it_acc)

    r_refs = (r1_ref, r2_ref, r3_ref, r4_ref)[:n_fg]

    def accumulate(masked):
        tv = t_ref[0]                                  # (s_blk, cols), native dtype
        if masked:
            row = lax.broadcasted_iota(jnp.int32, (s_blk, cols), 0)
            valid = (s * s_blk + row) < rows_valid
        for k in range(n_fg):                          # static unroll over classes
            rv = r_refs[k][0, 0].astype(jnp.float32)   # (s_blk, cols)
            mk = tv == (k + 1)
            if masked:
                rv = jnp.where(valid, rv, 0.0)         # where (not *): NaN-safe
                mk = jnp.logical_and(mk, valid)
            mkf = mk.astype(jnp.float32)
            rvm = rv * mkf
            if defer:
                # Sublane-split reshape is vreg-aligned -> pure vreg adds;
                # cross-lane reduces are deferred to the finalize.
                g = s_blk // 8
                rs_acc[k] = rs_acc[k] + rv.reshape(g, 8, cols).sum(axis=0)
                ts_acc[k] = ts_acc[k] + mkf.reshape(g, 8, cols).sum(axis=0)
                it_acc[k] = it_acc[k] + rvm.reshape(g, 8, cols).sum(axis=0)
            else:
                rs_acc[k] = rs_acc[k] + jnp.sum(rv)
                ts_acc[k] = ts_acc[k] + jnp.sum(mkf)
                it_acc[k] = it_acc[k] + jnp.sum(rvm)

    ragged = (rows_valid % s_blk) != 0                 # static
    if ragged:
        # Mask only the last chunk; all earlier chunks are fully in-bounds.
        @pl.when(s < n_s - 1)
        def _():
            accumulate(masked=False)

        @pl.when(s == n_s - 1)
        def _():
            accumulate(masked=True)
    else:
        accumulate(masked=False)

    # Finalise on the last chunk only: per-class (1 - dice) into the (1,1,n_fg)
    # output block (resident across the chunk axis, written once per b).
    @pl.when(s == n_s - 1)
    def _():
        eps = jnp.float32(1e-6)
        lane = lax.broadcasted_iota(jnp.int32, (1, 1, n_fg), 2)
        out = jnp.zeros((1, 1, n_fg), jnp.float32)
        for k in range(n_fg):
            if defer:
                rs = jnp.sum(rs_acc[k])
                ts = jnp.sum(ts_acc[k])
                it = jnp.sum(it_acc[k])
            else:
                rs = rs_acc[k][0, 0]
                ts = ts_acc[k][0, 0]
                it = it_acc[k][0, 0]
            dice = (2.0 * it + eps) / (ts + rs + eps)
            out = jnp.where(lane == k, 1.0 - dice, out)
        out_ref[...] = out


def _input_vmem_bytes(s_blk, cols, r_itemsize, t_itemsize, n_fg):
    lanes = _round_up(cols, 128)                       # VMEM lane padding
    return 2 * s_blk * lanes * (n_fg * r_itemsize + t_itemsize)


def multi_soft_dice_loss(result, target, total_classes=5, train=True,
                         block_sublanes=2048):
    """Pallas TPU implementation of Multi_Soft_Dice_Loss.forward."""
    assert total_classes == 5, "module hardcodes 4 foreground-class weights"
    assert block_sublanes % 32 == 0, "sublane tiles must be multiples of 32"
    B, C, D, H, W = result.shape
    assert C == total_classes
    assert target.shape == (B, 1, D, H, W)
    n_fg = total_classes - 1          # classes 1..4, matching `for m in range(4)`

    S = D * H * W
    # Pick a copy-free 2D (rows, cols) view of the flattened spatial volume.
    if S % 128 == 0:
        rows, cols = S // 128, 128    # lane-dense: optimal layout
    else:
        rows, cols = D * H, W         # full-extent lane block; no pad/copy
    r = result.reshape(B, C, rows, cols)      # free (contiguous) reshape
    t = target.reshape(B, rows, cols)         # free (contiguous) reshape

    s_blk = min(block_sublanes, _round_up(rows, 32))   # mult of 32: int8/bf16-safe
    r_isz = r.dtype.itemsize
    t_isz = t.dtype.itemsize

    # Keep the double-buffered working set well under v7x's 64 MiB physical VMEM.
    VMEM_INPUT_CAP = 36 * 1024 * 1024
    while s_blk > 32 and _input_vmem_bytes(s_blk, cols, r_isz, t_isz, n_fg) > VMEM_INPUT_CAP:
        s_blk = max(32, _round_up(s_blk // 2, 32))

    n_chunks = pl.cdiv(rows, s_blk)
    defer = (cols == 128)             # deferred (8,128) partials on the fast path
    acc_shape = (n_fg, 8, cols) if defer else (n_fg, 1, 1)

    # Raise scoped VMEM only when a user sweep actually needs it (v5e default 16 MiB).
    est_in = _input_vmem_bytes(s_blk, cols, r_isz, t_isz, n_fg)
    vmem_limit = est_in + 8 * 1024 * 1024 if est_in > 12 * 1024 * 1024 else None

    kernel = functools.partial(_dice_kernel, n_fg, s_blk, rows, cols, defer)

    target_spec = pl.BlockSpec((1, s_blk, cols), lambda b, s: (b, s, 0))
    result_specs = [
        pl.BlockSpec((1, 1, s_blk, cols), (lambda b, s, _c=c: (b, _c, s, 0)))
        for c in range(1, n_fg + 1)   # only foreground classes are ever read
    ]

    one_minus_dice = pl.pallas_call(
        kernel,
        out_shape=jax.ShapeDtypeStruct((B, 1, n_fg), jnp.float32),
        grid_spec=pltpu.PrefetchScalarGridSpec(
            num_scalar_prefetch=0,
            grid=(B, n_chunks),
            in_specs=[target_spec] + result_specs,
            out_specs=pl.BlockSpec((1, 1, n_fg), lambda b, s: (b, 0, 0)),
            scratch_shapes=[pltpu.VMEM(acc_shape, jnp.float32)] * 3,
        ),
        compiler_params=pltpu.CompilerParams(
            dimension_semantics=("parallel", "arbitrary"),
            vmem_limit_bytes=vmem_limit),
    )(t, r, r, r, r)

    weights = (jnp.asarray([2.0, 0.4, 0.9, 0.7], jnp.float32)
               if train else jnp.ones((n_fg,), jnp.float32))
    return jnp.sum(one_minus_dice[:, 0, :] * weights[None, :]) / B


def _reference_loss(result, target, total_classes=5, train=True):
    """Pure-JAX transliteration of the PyTorch forward for verification."""
    B = result.shape[0]
    tgt = target[:, 0]
    weight = [2, 0.4, 0.9, 0.7]
    loss = 0.0
    for i in range(B):
        for j in range(1, total_classes):
            eps = 1e-6
            rs = jnp.sum(result[i, j])
            m = (tgt[i] == j).astype(jnp.float32)
            ts = jnp.sum(m)
            inter = jnp.sum(result[i, j] * m)
            dice = (2.0 * inter + eps) / (ts + rs + eps)
            l = 1.0 - dice
            loss = loss + (l * weight[j - 1] if train else l)
    return loss / B


if __name__ == "__main__":
    key = jax.random.PRNGKey(0)
    k1, k2, k3, k4 = jax.random.split(key, 4)

    # --- Lane-dense path: S = 8*24*32 = 6144 (multiple of 128), rows = 48. ---
    B, C, D, H, W = 2, 5, 8, 24, 32
    logits = jax.random.normal(k1, (B, C, D, H, W), dtype=jnp.float32)
    result = jax.nn.softmax(logits, axis=1)            # probabilities over classes
    target = jax.random.randint(k2, (B, 1, D, H, W), 0, 5, dtype=jnp.int32)

    # Train mode, small chunk size so the multi-chunk accumulation, the
    # unmasked steady-state body and the masked last chunk are all exercised
    # (rows=48 -> chunks of 32: one unmasked, one ragged).
    ref = jax.block_until_ready(
        _reference_loss(result, target, total_classes=5, train=True))
    out = jax.block_until_ready(
        multi_soft_dice_loss(result, target, total_classes=5, train=True,
                             block_sublanes=32))
    assert jnp.allclose(out, ref, rtol=1e-5, atol=1e-5), (out, ref)

    # Eval mode (unweighted), default tile: single ragged chunk with rows < s_blk.
    ref_eval = jax.block_until_ready(
        _reference_loss(result, target, total_classes=5, train=False))
    out_eval = jax.block_until_ready(
        multi_soft_dice_loss(result, target, total_classes=5, train=False))
    assert jnp.allclose(out_eval, ref_eval, rtol=1e-5, atol=1e-5), (
        out_eval, ref_eval)

    # --- Copy-free fallback path: S = 3*5*64 = 960, NOT a multiple of 128. ---
    B2, D2, H2, W2 = 2, 3, 5, 64
    logits2 = jax.random.normal(k3, (B2, C, D2, H2, W2), dtype=jnp.float32)
    result2 = jax.nn.softmax(logits2, axis=1)
    target2 = jax.random.randint(k4, (B2, 1, D2, H2, W2), 0, 5, dtype=jnp.int32)
    ref2 = jax.block_until_ready(
        _reference_loss(result2, target2, total_classes=5, train=True))
    out2 = jax.block_until_ready(
        multi_soft_dice_loss(result2, target2, total_classes=5, train=True))
    assert jnp.allclose(out2, ref2, rtol=1e-5, atol=1e-5), (out2, ref2)

    print("KERNEL_OK")
</pallas_src>

<mosaic_0001>
module attributes {stable_mosaic.version = 11 : i64} {
  func.func @_dice_kernel(%arg0: i32, %arg1: i32, %arg2: memref<1x32x128xi32, #tpu.memory_space<vmem>>, %arg3: memref<1x1x32x128xf32, #tpu.memory_space<vmem>>, %arg4: memref<1x1x32x128xf32, #tpu.memory_space<vmem>>, %arg5: memref<1x1x32x128xf32, #tpu.memory_space<vmem>>, %arg6: memref<1x1x32x128xf32, #tpu.memory_space<vmem>>, %arg7: memref<1x1x4xf32, #tpu.memory_space<vmem>>, %arg8: memref<4x8x128xf32, #tpu.memory_space<vmem>>, %arg9: memref<4x8x128xf32, #tpu.memory_space<vmem>>, %arg10: memref<4x8x128xf32, #tpu.memory_space<vmem>>) attributes {dimension_semantics = [#tpu.dimension_semantics<parallel>, #tpu.dimension_semantics<arbitrary>], iteration_bounds = array<i64: 2, 2>, scalar_prefetch = 0 : i64, scratch_operands = 3 : i64, tpu.core_type = #tpu.core_type<tc>, window_params = [{transform_indices = @transform_0, window_bounds = array<i64: 1, 32, 128>}, {transform_indices = @transform_1, window_bounds = array<i64: 1, 1, 32, 128>}, {transform_indices = @transform_2, window_bounds = array<i64: 1, 1, 32, 128>}, {transform_indices = @transform_3, window_bounds = array<i64: 1, 1, 32, 128>}, {transform_indices = @transform_4, window_bounds = array<i64: 1, 1, 32, 128>}, {transform_indices = @transform_5, window_bounds = array<i64: 1, 1, 4>}]} {
    %c0_i32 = arith.constant 0 : i32
    %0 = arith.cmpi eq, %arg1, %c0_i32 : i32
    %1 = arith.extui %0 : i1 to i32
    %c0_i32_0 = arith.constant 0 : i32
    %2 = arith.cmpi ne, %1, %c0_i32_0 : i32
    scf.if %2 {
      %cst = arith.constant 0.000000e+00 : f32
      %12 = vector.broadcast %cst : f32 to vector<4x8x128xf32>
      %c0 = arith.constant 0 : index
      %c0_6 = arith.constant 0 : index
      %c0_7 = arith.constant 0 : index
      %13 = vector.load %arg8[%c0, %c0_6, %c0_7] : memref<4x8x128xf32, #tpu.memory_space<vmem>>, vector<4x8x128xf32>
      tpu.vector_store %arg8[%c0, %c0_6, %c0_7], %12 {strides = array<i32>} : memref<4x8x128xf32, #tpu.memory_space<vmem>>, vector<4x8x128xf32>,
      %cst_8 = arith.constant 0.000000e+00 : f32
      %14 = vector.broadcast %cst_8 : f32 to vector<4x8x128xf32>
      %c0_9 = arith.constant 0 : index
      %c0_10 = arith.constant 0 : index
      %c0_11 = arith.constant 0 : index
      %15 = vector.load %arg9[%c0_9, %c0_10, %c0_11] : memref<4x8x128xf32, #tpu.memory_space<vmem>>, vector<4x8x128xf32>
      tpu.vector_store %arg9[%c0_9, %c0_10, %c0_11], %14 {strides = array<i32>} : memref<4x8x128xf32, #tpu.memory_space<vmem>>, vector<4x8x128xf32>,
      %cst_12 = arith.constant 0.000000e+00 : f32
      %16 = vector.broadcast %cst_12 : f32 to vector<4x8x128xf32>
      %c0_13 = arith.constant 0 : index
      %c0_14 = arith.constant 0 : index
      %c0_15 = arith.constant 0 : index
      %17 = vector.load %arg10[%c0_13, %c0_14, %c0_15] : memref<4x8x128xf32, #tpu.memory_space<vmem>>, vector<4x8x128xf32>
      tpu.vector_store %arg10[%c0_13, %c0_14, %c0_15], %16 {strides = array<i32>} : memref<4x8x128xf32, #tpu.memory_space<vmem>>, vector<4x8x128xf32>,
    } else {
    }
    %c1_i32 = arith.constant 1 : i32
    %3 = arith.cmpi slt, %arg1, %c1_i32 : i32
    %4 = arith.extui %3 : i1 to i32
    %c0_i32_1 = arith.constant 0 : i32
    %5 = arith.cmpi ne, %4, %c0_i32_1 : i32
    scf.if %5 {
      %c0 = arith.constant 0 : index
      %c0_6 = arith.constant 0 : index
      %c0_7 = arith.constant 0 : index
      %12 = vector.load %arg2[%c0, %c0_6, %c0_7] : memref<1x32x128xi32, #tpu.memory_space<vmem>>, vector<1x32x128xi32>
      %13 = vector.shape_cast %12 : vector<1x32x128xi32> to vector<32x128xi32>
      %c0_8 = arith.constant 0 : index
      %c0_9 = arith.constant 0 : index
      %c0_10 = arith.constant 0 : index
      %c0_11 = arith.constant 0 : index
      %14 = vector.load %arg3[%c0_8, %c0_9, %c0_10, %c0_11] : memref<1x1x32x128xf32, #tpu.memory_space<vmem>>, vector<1x1x32x128xf32>
      %15 = vector.shape_cast %14 : vector<1x1x32x128xf32> to vector<32x128xf32>
      %c1_i32_12 = arith.constant 1 : i32
      %16 = vector.broadcast %c1_i32_12 : i32 to vector<32x128xi32>
      %17 = arith.cmpi eq, %13, %16 : vector<32x128xi32>
      %18 = arith.extui %17 : vector<32x128xi1> to vector<32x128xi32>
      %19 = arith.sitofp %18 : vector<32x128xi32> to vector<32x128xf32>
      %20 = arith.mulf %15, %19 : vector<32x128xf32>
      %c0_13 = arith.constant 0 : index
      %c0_14 = arith.constant 0 : index
      %c0_15 = arith.constant 0 : index
      %21 = vector.load %arg8[%c0_13, %c0_14, %c0_15] : memref<4x8x128xf32, #tpu.memory_space<vmem>>, vector<1x8x128xf32>
      %22 = vector.shape_cast %21 : vector<1x8x128xf32> to vector<8x128xf32>
      %23 = vector.shape_cast %15 : vector<32x128xf32> to vector<4x8x128xf32>
      %cst = arith.constant dense<0.000000e+00> : vector<8x128xf32>
      %24 = vector.multi_reduction <add>, %23, %cst [0] : vector<4x8x128xf32> to vector<8x128xf32>
      %25 = arith.addf %22, %24 : vector<8x128xf32>
      %c0_16 = arith.constant 0 : index
      %c0_17 = arith.constant 0 : index
      %c0_18 = arith.constant 0 : index
      %26 = vector.load %arg8[%c0_16, %c0_17, %c0_18] : memref<4x8x128xf32, #tpu.memory_space<vmem>>, vector<1x8x128xf32>
      %27 = vector.shape_cast %26 : vector<1x8x128xf32> to vector<8x128xf32>
      %28 = vector.shape_cast %25 : vector<8x128xf32> to vector<1x8x128xf32>
      tpu.vector_store %arg8[%c0_16, %c0_17, %c0_18], %28 {strides = array<i32>} : memref<4x8x128xf32, #tpu.memory_space<vmem>>, vector<1x8x128xf32>,
      %c0_19 = arith.constant 0 : index
      %c0_20 = arith.constant 0 : index
      %c0_21 = arith.constant 0 : index
      %29 = vector.load %arg9[%c0_19, %c0_20, %c0_21] : memref<4x8x128xf32, #tpu.memory_space<vmem>>, vector<1x8x128xf32>
      %30 = vector.shape_cast %29 : vector<1x8x128xf32> to vector<8x128xf32>
      %31 = vector.shape_cast %19 : vector<32x128xf32> to vector<4x8x128xf32>
      %cst_22 = arith.constant dense<0.000000e+00> : vector<8x128xf32>
      %32 = vector.multi_reduction <add>, %31, %cst_22 [0] : vector<4x8x128xf32> to vector<8x128xf32>
      %33 = arith.addf %30, %32 : vector<8x128xf32>
      %c0_23 = arith.constant 0 : index
      %c0_24 = arith.constant 0 : index
      %c0_25 = arith.constant 0 : index
      %34 = vector.load %arg9[%c0_23, %c0_24, %c0_25] : memref<4x8x128xf32, #tpu.memory_space<vmem>>, vector<1x8x128xf32>
      %35 = vector.shape_cast %34 : vector<1x8x128xf32> to vector<8x128xf32>
      %36 = vector.shape_cast %33 : vector<8x128xf32> to vector<1x8x128xf32>
      tpu.vector_store %arg9[%c0_23, %c0_24, %c0_25], %36 {strides = array<i32>} : memref<4x8x128xf32, #tpu.memory_space<vmem>>, vector<1x8x128xf32>,
      %c0_26 = arith.constant 0 : index
      %c0_27 = arith.constant 0 : index
      %c0_28 = arith.constant 0 : index
      %37 = vector.load %arg10[%c0_26, %c0_27, %c0_28] : memref<4x8x128xf32, #tpu.memory_space<vmem>>, vector<1x8x128xf32>
      %38 = vector.shape_cast %37 : vector<1x8x128xf32> to vector<8x128xf32>
      %39 = vector.shape_cast %20 : vector<32x128xf32> to vector<4x8x128xf32>
      %cst_29 = arith.constant dense<0.000000e+00> : vector<8x128xf32>
      %40 = vector.multi_reduction <add>, %39, %cst_29 [0] : vector<4x8x128xf32> to vector<8x128xf32>
      %41 = arith.addf %38, %40 : vector<8x128xf32>
      %c0_30 = arith.constant 0 : index
      %c0_31 = arith.constant 0 : index
      %c0_32 = arith.constant 0 : index
      %42 = vector.load %arg10[%c0_30, %c0_31, %c0_32] : memref<4x8x128xf32, #tpu.memory_space<vmem>>, vector<1x8x128xf32>
      %43 = vector.shape_cast %42 : vector<1x8x128xf32> to vector<8x128xf32>
      %44 = vector.shape_cast %41 : vector<8x128xf32> to vector<1x8x128xf32>
      tpu.vector_store %arg10[%c0_30, %c0_31, %c0_32], %44 {strides = array<i32>} : memref<4x8x128xf32, #tpu.memory_space<vmem>>, vector<1x8x128xf32>,
      %c0_33 = arith.constant 0 : index
      %c0_34 = arith.constant 0 : index
      %c0_35 = arith.constant 0 : index
      %c0_36 = arith.constant 0 : index
      %45 = vector.load %arg4[%c0_33, %c0_34, %c0_35, %c0_36] : memref<1x1x32x128xf32, #tpu.memory_space<vmem>>, vector<1x1x32x128xf32>
      %46 = vector.shape_cast %45 : vector<1x1x32x128xf32> to vector<32x128xf32>
      %c2_i32 = arith.constant 2 : i32
      %47 = vector.broadcast %c2_i32 : i32 to vector<32x128xi32>
      %48 = arith.cmpi eq, %13, %47 : vector<32x128xi32>
      %49 = arith.extui %48 : vector<32x128xi1> to vector<32x128xi32>
      %50 = arith.sitofp %49 : vector<32x128xi32> to vector<32x128xf32>
      %51 = arith.mulf %46, %50 : vector<32x128xf32>
      %c1 = arith.constant 1 : index
      %c0_37 = arith.constant 0 : index
      %c0_38 = arith.constant 0 : index
      %52 = vector.load %arg8[%c1, %c0_37, %c0_38] : memref<4x8x128xf32, #tpu.memory_space<vmem>>, vector<1x8x128xf32>
      %53 = vector.shape_cast %52 : vector<1x8x128xf32> to vector<8x128xf32>
      %54 = vector.shape_cast %46 : vector<32x128xf32> to vector<4x8x128xf32>
      %cst_39 = arith.constant dense<0.000000e+00> : vector<8x128xf32>
      %55 = vector.multi_reduction <add>, %54, %cst_39 [0] : vector<4x8x128xf32> to vector<8x128xf32>
      %56 = arith.addf %53, %55 : vector<8x128xf32>
      %c1_40 = arith.constant 1 : index
      %c0_41 = arith.constant 0 : index
      %c0_42 = arith.constant 0 : index
      %57 = vector.load %arg8[%c1_40, %c0_41, %c0_42] : memref<4x8x128xf32, #tpu.memory_space<vmem>>, vector<1x8x128xf32>
      %58 = vector.shape_cast %57 : vector<1x8x128xf32> to vector<8x128xf32>
      %59 = vector.shape_cast %56 : vector<8x128xf32> to vector<1x8x128xf32>
      tpu.vector_store %arg8[%c1_40, %c0_41, %c0_42], %59 {strides = array<i32>} : memref<4x8x128xf32, #tpu.memory_space<vmem>>, vector<1x8x128xf32>,
      %c1_43 = arith.constant 1 : index
      %c0_44 = arith.constant 0 : index
      %c0_45 = arith.constant 0 : index
      %60 = vector.load %arg9[%c1_43, %c0_44, %c0_45] : memref<4x8x128xf32, #tpu.memory_space<vmem>>, vector<1x8x128xf32>
      %61 = vector.shape_cast %60 : vector<1x8x128xf32> to vector<8x128xf32>
      %62 = vector.shape_cast %50 : vector<32x128xf32> to vector<4x8x128xf32>
      %cst_46 = arith.constant dense<0.000000e+00> : vector<8x128xf32>
      %63 = vector.multi_reduction <add>, %62, %cst_46 [0] : vector<4x8x128xf32> to vector<8x128xf32>
      %64 = arith.addf %61, %63 : vector<8x128xf32>
      %c1_47 = arith.constant 1 : index
      %c0_48 = arith.constant 0 : index
      %c0_49 = arith.constant 0 : index
      %65 = vector.load %arg9[%c1_47, %c0_48, %c0_49] : memref<4x8x128xf32, #tpu.memory_space<vmem>>, vector<1x8x128xf32>
      %66 = vector.shape_cast %65 : vector<1x8x128xf32> to vector<8x128xf32>
      %67 = vector.shape_cast %64 : vector<8x128xf32> to vector<1x8x128xf32>
      tpu.vector_store %arg9[%c1_47, %c0_48, %c0_49], %67 {strides = array<i32>} : memref<4x8x128xf32, #tpu.memory_space<vmem>>, vector<1x8x128xf32>,
      %c1_50 = arith.constant 1 : index
      %c0_51 = arith.constant 0 : index
      %c0_52 = arith.constant 0 : index
      %68 = vector.load %arg10[%c1_50, %c0_51, %c0_52] : memref<4x8x128xf32, #tpu.memory_space<vmem>>, vector<1x8x128xf32>
      %69 = vector.shape_cast %68 : vector<1x8x128xf32> to vector<8x128xf32>
      %70 = vector.shape_cast %51 : vector<32x128xf32> to vector<4x8x128xf32>
      %cst_53 = arith.constant dense<0.000000e+00> : vector<8x128xf32>
      %71 = vector.multi_reduction <add>, %70, %cst_53 [0] : vector<4x8x128xf32> to vector<8x128xf32>
      %72 = arith.addf %69, %71 : vector<8x128xf32>
      %c1_54 = arith.constant 1 : index
      %c0_55 = arith.constant 0 : index
      %c0_56 = arith.constant 0 : index
      %73 = vector.load %arg10[%c1_54, %c0_55, %c0_56] : memref<4x8x128xf32, #tpu.memory_space<vmem>>, vector<1x8x128xf32>
      %74 = vector.shape_cast %73 : vector<1x8x128xf32> to vector<8x128xf32>
      %75 = vector.shape_cast %72 : vector<8x128xf32> to vector<1x8x128xf32>
      tpu.vector_store %arg10[%c1_54, %c0_55, %c0_56], %75 {strides = array<i32>} : memref<4x8x128xf32, #tpu.memory_space<vmem>>, vector<1x8x128xf32>,
      %c0_57 = arith.constant 0 : index
      %c0_58 = arith.constant 0 : index
      %c0_59 = arith.constant 0 : index
      %c0_60 = arith.constant 0 : index
      %76 = vector.load %arg5[%c0_57, %c0_58, %c0_59, %c0_60] : memref<1x1x32x128xf32, #tpu.memory_space<vmem>>, vector<1x1x32x128xf32>
      %77 = vector.shape_cast %76 : vector<1x1x32x128xf32> to vector<32x128xf32>
      %c3_i32 = arith.constant 3 : i32
      %78 = vector.broadcast %c3_i32 : i32 to vector<32x128xi32>
      %79 = arith.cmpi eq, %13, %78 : vector<32x128xi32>
      %80 = arith.extui %79 : vector<32x128xi1> to vector<32x128xi32>
      %81 = arith.sitofp %80 : vector<32x128xi32> to vector<32x128xf32>
      %82 = arith.mulf %77, %81 : vector<32x128xf32>
      %c2 = arith.constant 2 : index
      %c0_61 = arith.constant 0 : index
      %c0_62 = arith.constant 0 : index
      %83 = vector.load %arg8[%c2, %c0_61, %c0_62] : memref<4x8x128xf32, #tpu.memory_space<vmem>>, vector<1x8x128xf32>
      %84 = vector.shape_cast %83 : vector<1x8x128xf32> to vector<8x128xf32>
      %85 = vector.shape_cast %77 : vector<32x128xf32> to vector<4x8x128xf32>
      %cst_63 = arith.constant dense<0.000000e+00> : vector<8x128xf32>
      %86 = vector.multi_reduction <add>, %85, %cst_63 [0] : vector<4x8x128xf32> to vector<8x128xf32>
      %87 = arith.addf %84, %86 : vector<8x128xf32>
      %c2_64 = arith.constant 2 : index
      %c0_65 = arith.constant 0 : index
      %c0_66 = arith.constant 0 : index
      %88 = vector.load %arg8[%c2_64, %c0_65, %c0_66] : memref<4x8x128xf32, #tpu.memory_space<vmem>>, vector<1x8x128xf32>
      %89 = vector.shape_cast %88 : vector<1x8x128xf32> to vector<8x128xf32>
      %90 = vector.shape_cast %87 : vector<8x128xf32> to vector<1x8x128xf32>
      tpu.vector_store %arg8[%c2_64, %c0_65, %c0_66], %90 {strides = array<i32>} : memref<4x8x128xf32, #tpu.memory_space<vmem>>, vector<1x8x128xf32>,
      %c2_67 = arith.constant 2 : index
      %c0_68 = arith.constant 0 : index
      %c0_69 = arith.constant 0 : index
      %91 = vector.load %arg9[%c2_67, %c0_68, %c0_69] : memref<4x8x128xf32, #tpu.memory_space<vmem>>, vector<1x8x128xf32>
      %92 = vector.shape_cast %91 : vector<1x8x128xf32> to vector<8x128xf32>
      %93 = vector.shape_cast %81 : vector<32x128xf32> to vector<4x8x128xf32>
      %cst_70 = arith.constant dense<0.000000e+00> : vector<8x128xf32>
      %94 = vector.multi_reduction <add>, %93, %cst_70 [0] : vector<4x8x128xf32> to vector<8x128xf32>
      %95 = arith.addf %92, %94 : vector<8x128xf32>
      %c2_71 = arith.constant 2 : index
      %c0_72 = arith.constant 0 : index
      %c0_73 = arith.constant 0 : index
      %96 = vector.load %arg9[%c2_71, %c0_72, %c0_73] : memref<4x8x128xf32, #tpu.memory_space<vmem>>, vector<1x8x128xf32>
      %97 = vector.shape_cast %96 : vector<1x8x128xf32> to vector<8x128xf32>
      %98 = vector.shape_cast %95 : vector<8x128xf32> to vector<1x8x128xf32>
      tpu.vector_store %arg9[%c2_71, %c0_72, %c0_73], %98 {strides = array<i32>} : memref<4x8x128xf32, #tpu.memory_space<vmem>>, vector<1x8x128xf32>,
      %c2_74 = arith.constant 2 : index
      %c0_75 = arith.constant 0 : index
      %c0_76 = arith.constant 0 : index
      %99 = vector.load %arg10[%c2_74, %c0_75, %c0_76] : memref<4x8x128xf32, #tpu.memory_space<vmem>>, vector<1x8x128xf32>
      %100 = vector.shape_cast %99 : vector<1x8x128xf32> to vector<8x128xf32>
      %101 = vector.shape_cast %82 : vector<32x128xf32> to vector<4x8x128xf32>
      %cst_77 = arith.constant dense<0.000000e+00> : vector<8x128xf32>
      %102 = vector.multi_reduction <add>, %101, %cst_77 [0] : vector<4x8x128xf32> to vector<8x128xf32>
      %103 = arith.addf %100, %102 : vector<8x128xf32>
      %c2_78 = arith.constant 2 : index
      %c0_79 = arith.constant 0 : index
      %c0_80 = arith.constant 0 : index
      %104 = vector.load %arg10[%c2_78, %c0_79, %c0_80] : memref<4x8x128xf32, #tpu.memory_space<vmem>>, vector<1x8x128xf32>
      %105 = vector.shape_cast %104 : vector<1x8x128xf32> to vector<8x128xf32>
      %106 = vector.shape_cast %103 : vector<8x128xf32> to vector<1x8x128xf32>
      tpu.vector_store %arg10[%c2_78, %c0_79, %c0_80], %106 {strides = array<i32>} : memref<4x8x128xf32, #tpu.memory_space<vmem>>, vector<1x8x128xf32>,
      %c0_81 = arith.constant 0 : index
      %c0_82 = arith.constant 0 : index
      %c0_83 = arith.constant 0 : index
      %c0_84 = arith.constant 0 : index
      %107 = vector.load %arg6[%c0_81, %c0_82, %c0_83, %c0_84] : memref<1x1x32x128xf32, #tpu.memory_space<vmem>>, vector<1x1x32x128xf32>
      %108 = vector.shape_cast %107 : vector<1x1x32x128xf32> to vector<32x128xf32>
      %c4_i32 = arith.constant 4 : i32
      %109 = vector.broadcast %c4_i32 : i32 to vector<32x128xi32>
      %110 = arith.cmpi eq, %13, %109 : vector<32x128xi32>
      %111 = arith.extui %110 : vector<32x128xi1> to vector<32x128xi32>
      %112 = arith.sitofp %111 : vector<32x128xi32> to vector<32x128xf32>
      %113 = arith.mulf %108, %112 : vector<32x128xf32>
      %c3 = arith.constant 3 : index
      %c0_85 = arith.constant 0 : index
      %c0_86 = arith.constant 0 : index
      %114 = vector.load %arg8[%c3, %c0_85, %c0_86] : memref<4x8x128xf32, #tpu.memory_space<vmem>>, vector<1x8x128xf32>
      %115 = vector.shape_cast %114 : vector<1x8x128xf32> to vector<8x128xf32>
      %116 = vector.shape_cast %108 : vector<32x128xf32> to vector<4x8x128xf32>
      %cst_87 = arith.constant dense<0.000000e+00> : vector<8x128xf32>
      %117 = vector.multi_reduction <add>, %116, %cst_87 [0] : vector<4x8x128xf32> to vector<8x128xf32>
      %118 = arith.addf %115, %117 : vector<8x128xf32>
      %c3_88 = arith.constant 3 : index
      %c0_89 = arith.constant 0 : index
      %c0_90 = arith.constant 0 : index
      %119 = vector.load %arg8[%c3_88, %c0_89, %c0_90] : memref<4x8x128xf32, #tpu.memory_space<vmem>>, vector<1x8x128xf32>
      %120 = vector.shape_cast %119 : vector<1x8x128xf32> to vector<8x128xf32>
      %121 = vector.shape_cast %118 : vector<8x128xf32> to vector<1x8x128xf32>
      tpu.vector_store %arg8[%c3_88, %c0_89, %c0_90], %121 {strides = array<i32>} : memref<4x8x128xf32, #tpu.memory_space<vmem>>, vector<1x8x128xf32>,
      %c3_91 = arith.constant 3 : index
      %c0_92 = arith.constant 0 : index
      %c0_93 = arith.constant 0 : index
      %122 = vector.load %arg9[%c3_91, %c0_92, %c0_93] : memref<4x8x128xf32, #tpu.memory_space<vmem>>, vector<1x8x128xf32>
      %123 = vector.shape_cast %122 : vector<1x8x128xf32> to vector<8x128xf32>
      %124 = vector.shape_cast %112 : vector<32x128xf32> to vector<4x8x128xf32>
      %cst_94 = arith.constant dense<0.000000e+00> : vector<8x128xf32>
      %125 = vector.multi_reduction <add>, %124, %cst_94 [0] : vector<4x8x128xf32> to vector<8x128xf32>
      %126 = arith.addf %123, %125 : vector<8x128xf32>
      %c3_95 = arith.constant 3 : index
      %c0_96 = arith.constant 0 : index
      %c0_97 = arith.constant 0 : index
      %127 = vector.load %arg9[%c3_95, %c0_96, %c0_97] : memref<4x8x128xf32, #tpu.memory_space<vmem>>, vector<1x8x128xf32>
      %128 = vector.shape_cast %127 : vector<1x8x128xf32> to vector<8x128xf32>
      %129 = vector.shape_cast %126 : vector<8x128xf32> to vector<1x8x128xf32>
      tpu.vector_store %arg9[%c3_95, %c0_96, %c0_97], %129 {strides = array<i32>} : memref<4x8x128xf32, #tpu.memory_space<vmem>>, vector<1x8x128xf32>,
      %c3_98 = arith.constant 3 : index
      %c0_99 = arith.constant 0 : index
      %c0_100 = arith.constant 0 : index
      %130 = vector.load %arg10[%c3_98, %c0_99, %c0_100] : memref<4x8x128xf32, #tpu.memory_space<vmem>>, vector<1x8x128xf32>
      %131 = vector.shape_cast %130 : vector<1x8x128xf32> to vector<8x128xf32>
      %132 = vector.shape_cast %113 : vector<32x128xf32> to vector<4x8x128xf32>
      %cst_101 = arith.constant dense<0.000000e+00> : vector<8x128xf32>
      %133 = vector.multi_reduction <add>, %132, %cst_101 [0] : vector<4x8x128xf32> to vector<8x128xf32>
      %134 = arith.addf %131, %133 : vector<8x128xf32>
      %c3_102 = arith.constant 3 : index
      %c0_103 = arith.constant 0 : index
      %c0_104 = arith.constant 0 : index
      %135 = vector.load %arg10[%c3_102, %c0_103, %c0_104] : memref<4x8x128xf32, #tpu.memory_space<vmem>>, vector<1x8x128xf32>
      %136 = vector.shape_cast %135 : vector<1x8x128xf32> to vector<8x128xf32>
      %137 = vector.shape_cast %134 : vector<8x128xf32> to vector<1x8x128xf32>
      tpu.vector_store %arg10[%c3_102, %c0_103, %c0_104], %137 {strides = array<i32>} : memref<4x8x128xf32, #tpu.memory_space<vmem>>, vector<1x8x128xf32>,
    } else {
    }
    %c1_i32_2 = arith.constant 1 : i32
    %6 = arith.cmpi eq, %arg1, %c1_i32_2 : i32
    %7 = arith.extui %6 : i1 to i32
    %c0_i32_3 = arith.constant 0 : i32
    %8 = arith.cmpi ne, %7, %c0_i32_3 : i32
    scf.if %8 {
      %c0 = arith.constant 0 : index
      %c0_6 = arith.constant 0 : index
      %c0_7 = arith.constant 0 : index
      %12 = vector.load %arg2[%c0, %c0_6, %c0_7] : memref<1x32x128xi32, #tpu.memory_space<vmem>>, vector<1x32x128xi32>
      %13 = vector.shape_cast %12 : vector<1x32x128xi32> to vector<32x128xi32>
      %14 = tpu.iota {dimensions = array<i32: 0>} : vector<32x128xi32>
      %c32_i32 = arith.constant 32 : i32
      %15 = arith.muli %arg1, %c32_i32 : i32
      %16 = vector.broadcast %15 : i32 to vector<32x128xi32>
      %17 = arith.addi %16, %14 : vector<32x128xi32>
      %c48_i32 = arith.constant 48 : i32
      %18 = vector.broadcast %c48_i32 : i32 to vector<32x128xi32>
      %19 = arith.cmpi slt, %17, %18 : vector<32x128xi32>
      %c0_8 = arith.constant 0 : index
      %c0_9 = arith.constant 0 : index
      %c0_10 = arith.constant 0 : index
      %c0_11 = arith.constant 0 : index
      %20 = vector.load %arg3[%c0_8, %c0_9, %c0_10, %c0_11] : memref<1x1x32x128xf32, #tpu.memory_space<vmem>>, vector<1x1x32x128xf32>
      %21 = vector.shape_cast %20 : vector<1x1x32x128xf32> to vector<32x128xf32>
      %c1_i32_12 = arith.constant 1 : i32
      %22 = vector.broadcast %c1_i32_12 : i32 to vector<32x128xi32>
      %23 = arith.cmpi eq, %13, %22 : vector<32x128xi32>
      %cst = arith.constant 0.000000e+00 : f32
      %24 = vector.broadcast %cst : f32 to vector<32x128xf32>
      %25 = arith.select %19, %21, %24 : vector<32x128xi1>, vector<32x128xf32>
      %26 = arith.andi %23, %19 : vector<32x128xi1>
      %27 = arith.extui %26 : vector<32x128xi1> to vector<32x128xi32>
      %28 = arith.sitofp %27 : vector<32x128xi32> to vector<32x128xf32>
      %29 = arith.mulf %25, %28 : vector<32x128xf32>
      %c0_13 = arith.constant 0 : index
      %c0_14 = arith.constant 0 : index
      %c0_15 = arith.constant 0 : index
      %30 = vector.load %arg8[%c0_13, %c0_14, %c0_15] : memref<4x8x128xf32, #tpu.memory_space<vmem>>, vector<1x8x128xf32>
      %31 = vector.shape_cast %30 : vector<1x8x128xf32> to vector<8x128xf32>
      %32 = vector.shape_cast %25 : vector<32x128xf32> to vector<4x8x128xf32>
      %cst_16 = arith.constant dense<0.000000e+00> : vector<8x128xf32>
      %33 = vector.multi_reduction <add>, %32, %cst_16 [0] : vector<4x8x128xf32> to vector<8x128xf32>
      %34 = arith.addf %31, %33 : vector<8x128xf32>
      %c0_17 = arith.constant 0 : index
      %c0_18 = arith.constant 0 : index
      %c0_19 = arith.constant 0 : index
      %35 = vector.load %arg8[%c0_17, %c0_18, %c0_19] : memref<4x8x128xf32, #tpu.memory_space<vmem>>, vector<1x8x128xf32>
      %36 = vector.shape_cast %35 : vector<1x8x128xf32> to vector<8x128xf32>
      %37 = vector.shape_cast %34 : vector<8x128xf32> to vector<1x8x128xf32>
      tpu.vector_store %arg8[%c0_17, %c0_18, %c0_19], %37 {strides = array<i32>} : memref<4x8x128xf32, #tpu.memory_space<vmem>>, vector<1x8x128xf32>,
      %c0_20 = arith.constant 0 : index
      %c0_21 = arith.constant 0 : index
      %c0_22 = arith.constant 0 : index
      %38 = vector.load %arg9[%c0_20, %c0_21, %c0_22] : memref<4x8x128xf32, #tpu.memory_space<vmem>>, vector<1x8x128xf32>
      %39 = vector.shape_cast %38 : vector<1x8x128xf32> to vector<8x128xf32>
      %40 = vector.shape_cast %28 : vector<32x128xf32> to vector<4x8x128xf32>
      %cst_23 = arith.constant dense<0.000000e+00> : vector<8x128xf32>
      %41 = vector.multi_reduction <add>, %40, %cst_23 [0] : vector<4x8x128xf32> to vector<8x128xf32>
      %42 = arith.addf %39, %41 : vector<8x128xf32>
      %c0_24 = arith.constant 0 : index
      %c0_25 = arith.constant 0 : index
      %c0_26 = arith.constant 0 : index
      %43 = vector.load %arg9[%c0_24, %c0_25, %c0_26] : memref<4x8x128xf32, #tpu.memory_space<vmem>>, vector<1x8x128xf32>
      %44 = vector.shape_cast %43 : vector<1x8x128xf32> to vector<8x128xf32>
      %45 = vector.shape_cast %42 : vector<8x128xf32> to vector<1x8x128xf32>
      tpu.vector_store %arg9[%c0_24, %c0_25, %c0_26], %45 {strides = array<i32>} : memref<4x8x128xf32, #tpu.memory_space<vmem>>, vector<1x8x128xf32>,
      %c0_27 = arith.constant 0 : index
      %c0_28 = arith.constant 0 : index
      %c0_29 = arith.constant 0 : index
      %46 = vector.load %arg10[%c0_27, %c0_28, %c0_29] : memref<4x8x128xf32, #tpu.memory_space<vmem>>, vector<1x8x128xf32>
      %47 = vector.shape_cast %46 : vector<1x8x128xf32> to vector<8x128xf32>
      %48 = vector.shape_cast %29 : vector<32x128xf32> to vector<4x8x128xf32>
      %cst_30 = arith.constant dense<0.000000e+00> : vector<8x128xf32>
      %49 = vector.multi_reduction <add>, %48, %cst_30 [0] : vector<4x8x128xf32> to vector<8x128xf32>
      %50 = arith.addf %47, %49 : vector<8x128xf32>
      %c0_31 = arith.constant 0 : index
      %c0_32 = arith.constant 0 : index
      %c0_33 = arith.constant 0 : index
      %51 = vector.load %arg10[%c0_31, %c0_32, %c0_33] : memref<4x8x128xf32, #tpu.memory_space<vmem>>, vector<1x8x128xf32>
      %52 = vector.shape_cast %51 : vector<1x8x128xf32> to vector<8x128xf32>
      %53 = vector.shape_cast %50 : vector<8x128xf32> to vector<1x8x128xf32>
      tpu.vector_store %arg10[%c0_31, %c0_32, %c0_33], %53 {strides = array<i32>} : memref<4x8x128xf32, #tpu.memory_space<vmem>>, vector<1x8x128xf32>,
      %c0_34 = arith.constant 0 : index
      %c0_35 = arith.constant 0 : index
      %c0_36 = arith.constant 0 : index
      %c0_37 = arith.constant 0 : index
      %54 = vector.load %arg4[%c0_34, %c0_35, %c0_36, %c0_37] : memref<1x1x32x128xf32, #tpu.memory_space<vmem>>, vector<1x1x32x128xf32>
      %55 = vector.shape_cast %54 : vector<1x1x32x128xf32> to vector<32x128xf32>
      %c2_i32 = arith.constant 2 : i32
      %56 = vector.broadcast %c2_i32 : i32 to vector<32x128xi32>
      %57 = arith.cmpi eq, %13, %56 : vector<32x128xi32>
      %cst_38 = arith.constant 0.000000e+00 : f32
      %58 = vector.broadcast %cst_38 : f32 to vector<32x128xf32>
      %59 = arith.select %19, %55, %58 : vector<32x128xi1>, vector<32x128xf32>
      %60 = arith.andi %57, %19 : vector<32x128xi1>
      %61 = arith.extui %60 : vector<32x128xi1> to vector<32x128xi32>
      %62 = arith.sitofp %61 : vector<32x128xi32> to vector<32x128xf32>
      %63 = arith.mulf %59, %62 : vector<32x128xf32>
      %c1 = arith.constant 1 : index
      %c0_39 = arith.constant 0 : index
      %c0_40 = arith.constant 0 : index
      %64 = vector.load %arg8[%c1, %c0_39, %c0_40] : memref<4x8x128xf32, #tpu.memory_space<vmem>>, vector<1x8x128xf32>
      %65 = vector.shape_cast %64 : vector<1x8x128xf32> to vector<8x128xf32>
      %66 = vector.shape_cast %59 : vector<32x128xf32> to vector<4x8x128xf32>
      %cst_41 = arith.constant dense<0.000000e+00> : vector<8x128xf32>
      %67 = vector.multi_reduction <add>, %66, %cst_41 [0] : vector<4x8x128xf32> to vector<8x128xf32>
      %68 = arith.addf %65, %67 : vector<8x128xf32>
      %c1_42 = arith.constant 1 : index
      %c0_43 = arith.constant 0 : index
      %c0_44 = arith.constant 0 : index
      %69 = vector.load %arg8[%c1_42, %c0_43, %c0_44] : memref<4x8x128xf32, #tpu.memory_space<vmem>>, vector<1x8x128xf32>
      %70 = vector.shape_cast %69 : vector<1x8x128xf32> to vector<8x128xf32>
      %71 = vector.shape_cast %68 : vector<8x128xf32> to vector<1x8x128xf32>
      tpu.vector_store %arg8[%c1_42, %c0_43, %c0_44], %71 {strides = array<i32>} : memref<4x8x128xf32, #tpu.memory_space<vmem>>, vector<1x8x128xf32>,
      %c1_45 = arith.constant 1 : index
      %c0_46 = arith.constant 0 : index
      %c0_47 = arith.constant 0 : index
      %72 = vector.load %arg9[%c1_45, %c0_46, %c0_47] : memref<4x8x128xf32, #tpu.memory_space<vmem>>, vector<1x8x128xf32>
      %73 = vector.shape_cast %72 : vector<1x8x128xf32> to vector<8x128xf32>
      %74 = vector.shape_cast %62 : vector<32x128xf32> to vector<4x8x128xf32>
      %cst_48 = arith.constant dense<0.000000e+00> : vector<8x128xf32>
      %75 = vector.multi_reduction <add>, %74, %cst_48 [0] : vector<4x8x128xf32> to vector<8x128xf32>
      %76 = arith.addf %73, %75 : vector<8x128xf32>
      %c1_49 = arith.constant 1 : index
      %c0_50 = arith.constant 0 : index
      %c0_51 = arith.constant 0 : index
      %77 = vector.load %arg9[%c1_49, %c0_50, %c0_51] : memref<4x8x128xf32, #tpu.memory_space<vmem>>, vector<1x8x128xf32>
      %78 = vector.shape_cast %77 : vector<1x8x128xf32> to vector<8x128xf32>
      %79 = vector.shape_cast %76 : vector<8x128xf32> to vector<1x8x128xf32>
      tpu.vector_store %arg9[%c1_49, %c0_50, %c0_51], %79 {strides = array<i32>} : memref<4x8x128xf32, #tpu.memory_space<vmem>>, vector<1x8x128xf32>,
      %c1_52 = arith.constant 1 : index
      %c0_53 = arith.constant 0 : index
      %c0_54 = arith.constant 0 : index
      %80 = vector.load %arg10[%c1_52, %c0_53, %c0_54] : memref<4x8x128xf32, #tpu.memory_space<vmem>>, vector<1x8x128xf32>
      %81 = vector.shape_cast %80 : vector<1x8x128xf32> to vector<8x128xf32>
      %82 = vector.shape_cast %63 : vector<32x128xf32> to vector<4x8x128xf32>
      %cst_55 = arith.constant dense<0.000000e+00> : vector<8x128xf32>
      %83 = vector.multi_reduction <add>, %82, %cst_55 [0] : vector<4x8x128xf32> to vector<8x128xf32>
      %84 = arith.addf %81, %83 : vector<8x128xf32>
      %c1_56 = arith.constant 1 : index
      %c0_57 = arith.constant 0 : index
      %c0_58 = arith.constant 0 : index
      %85 = vector.load %arg10[%c1_56, %c0_57, %c0_58] : memref<4x8x128xf32, #tpu.memory_space<vmem>>, vector<1x8x128xf32>
      %86 = vector.shape_cast %85 : vector<1x8x128xf32> to vector<8x128xf32>
      %87 = vector.shape_cast %84 : vector<8x128xf32> to vector<1x8x128xf32>
      tpu.vector_store %arg10[%c1_56, %c0_57, %c0_58], %87 {strides = array<i32>} : memref<4x8x128xf32, #tpu.memory_space<vmem>>, vector<1x8x128xf32>,
      %c0_59 = arith.constant 0 : index
      %c0_60 = arith.constant 0 : index
      %c0_61 = arith.constant 0 : index
      %c0_62 = arith.constant 0 : index
      %88 = vector.load %arg5[%c0_59, %c0_60, %c0_61, %c0_62] : memref<1x1x32x128xf32, #tpu.memory_space<vmem>>, vector<1x1x32x128xf32>
      %89 = vector.shape_cast %88 : vector<1x1x32x128xf32> to vector<32x128xf32>
      %c3_i32 = arith.constant 3 : i32
      %90 = vector.broadcast %c3_i32 : i32 to vector<32x128xi32>
      %91 = arith.cmpi eq, %13, %90 : vector<32x128xi32>
      %cst_63 = arith.constant 0.000000e+00 : f32
      %92 = vector.broadcast %cst_63 : f32 to vector<32x128xf32>
      %93 = arith.select %19, %89, %92 : vector<32x128xi1>, vector<32x128xf32>
      %94 = arith.andi %91, %19 : vector<32x128xi1>
      %95 = arith.extui %94 : vector<32x128xi1> to vector<32x128xi32>
      %96 = arith.sitofp %95 : vector<32x128xi32> to vector<32x128xf32>
      %97 = arith.mulf %93, %96 : vector<32x128xf32>
      %c2 = arith.constant 2 : index
      %c0_64 = arith.constant 0 : index
      %c0_65 = arith.constant 0 : index
      %98 = vector.load %arg8[%c2, %c0_64, %c0_65] : memref<4x8x128xf32, #tpu.memory_space<vmem>>, vector<1x8x128xf32>
      %99 = vector.shape_cast %98 : vector<1x8x128xf32> to vector<8x128xf32>
      %100 = vector.shape_cast %93 : vector<32x128xf32> to vector<4x8x128xf32>
      %cst_66 = arith.constant dense<0.000000e+00> : vector<8x128xf32>
      %101 = vector.multi_reduction <add>, %100, %cst_66 [0] : vector<4x8x128xf32> to vector<8x128xf32>
      %102 = arith.addf %99, %101 : vector<8x128xf32>
      %c2_67 = arith.constant 2 : index
      %c0_68 = arith.constant 0 : index
      %c0_69 = arith.constant 0 : index
      %103 = vector.load %arg8[%c2_67, %c0_68, %c0_69] : memref<4x8x128xf32, #tpu.memory_space<vmem>>, vector<1x8x128xf32>
      %104 = vector.shape_cast %103 : vector<1x8x128xf32> to vector<8x128xf32>
      %105 = vector.shape_cast %102 : vector<8x128xf32> to vector<1x8x128xf32>
      tpu.vector_store %arg8[%c2_67, %c0_68, %c0_69], %105 {strides = array<i32>} : memref<4x8x128xf32, #tpu.memory_space<vmem>>, vector<1x8x128xf32>,
      %c2_70 = arith.constant 2 : index
      %c0_71 = arith.constant 0 : index
      %c0_72 = arith.constant 0 : index
      %106 = vector.load %arg9[%c2_70, %c0_71, %c0_72] : memref<4x8x128xf32, #tpu.memory_space<vmem>>, vector<1x8x128xf32>
      %107 = vector.shape_cast %106 : vector<1x8x128xf32> to vector<8x128xf32>
      %108 = vector.shape_cast %96 : vector<32x128xf32> to vector<4x8x128xf32>
      %cst_73 = arith.constant dense<0.000000e+00> : vector<8x128xf32>
      %109 = vector.multi_reduction <add>, %108, %cst_73 [0] : vector<4x8x128xf32> to vector<8x128xf32>
      %110 = arith.addf %107, %109 : vector<8x128xf32>
      %c2_74 = arith.constant 2 : index
      %c0_75 = arith.constant 0 : index
      %c0_76 = arith.constant 0 : index
      %111 = vector.load %arg9[%c2_74, %c0_75, %c0_76] : memref<4x8x128xf32, #tpu.memory_space<vmem>>, vector<1x8x128xf32>
      %112 = vector.shape_cast %111 : vector<1x8x128xf32> to vector<8x128xf32>
      %113 = vector.shape_cast %110 : vector<8x128xf32> to vector<1x8x128xf32>
      tpu.vector_store %arg9[%c2_74, %c0_75, %c0_76], %113 {strides = array<i32>} : memref<4x8x128xf32, #tpu.memory_space<vmem>>, vector<1x8x128xf32>,
      %c2_77 = arith.constant 2 : index
      %c0_78 = arith.constant 0 : index
      %c0_79 = arith.constant 0 : index
      %114 = vector.load %arg10[%c2_77, %c0_78, %c0_79] : memref<4x8x128xf32, #tpu.memory_space<vmem>>, vector<1x8x128xf32>
      %115 = vector.shape_cast %114 : vector<1x8x128xf32> to vector<8x128xf32>
      %116 = vector.shape_cast %97 : vector<32x128xf32> to vector<4x8x128xf32>
      %cst_80 = arith.constant dense<0.000000e+00> : vector<8x128xf32>
      %117 = vector.multi_reduction <add>, %116, %cst_80 [0] : vector<4x8x128xf32> to vector<8x128xf32>
      %118 = arith.addf %115, %117 : vector<8x128xf32>
      %c2_81 = arith.constant 2 : index
      %c0_82 = arith.constant 0 : index
      %c0_83 = arith.constant 0 : index
      %119 = vector.load %arg10[%c2_81, %c0_82, %c0_83] : memref<4x8x128xf32, #tpu.memory_space<vmem>>, vector<1x8x128xf32>
      %120 = vector.shape_cast %119 : vector<1x8x128xf32> to vector<8x128xf32>
      %121 = vector.shape_cast %118 : vector<8x128xf32> to vector<1x8x128xf32>
      tpu.vector_store %arg10[%c2_81, %c0_82, %c0_83], %121 {strides = array<i32>} : memref<4x8x128xf32, #tpu.memory_space<vmem>>, vector<1x8x128xf32>,
      %c0_84 = arith.constant 0 : index
      %c0_85 = arith.constant 0 : index
      %c0_86 = arith.constant 0 : index
      %c0_87 = arith.constant 0 : index
      %122 = vector.load %arg6[%c0_84, %c0_85, %c0_86, %c0_87] : memref<1x1x32x128xf32, #tpu.memory_space<vmem>>, vector<1x1x32x128xf32>
      %123 = vector.shape_cast %122 : vector<1x1x32x128xf32> to vector<32x128xf32>
      %c4_i32 = arith.constant 4 : i32
      %124 = vector.broadcast %c4_i32 : i32 to vector<32x128xi32>
      %125 = arith.cmpi eq, %13, %124 : vector<32x128xi32>
      %cst_88 = arith.constant 0.000000e+00 : f32
      %126 = vector.broadcast %cst_88 : f32 to vector<32x128xf32>
      %127 = arith.select %19, %123, %126 : vector<32x128xi1>, vector<32x128xf32>
      %128 = arith.andi %125, %19 : vector<32x128xi1>
      %129 = arith.extui %128 : vector<32x128xi1> to vector<32x128xi32>
      %130 = arith.sitofp %129 : vector<32x128xi32> to vector<32x128xf32>
      %131 = arith.mulf %127, %130 : vector<32x128xf32>
      %c3 = arith.constant 3 : index
      %c0_89 = arith.constant 0 : index
      %c0_90 = arith.constant 0 : index
      %132 = vector.load %arg8[%c3, %c0_89, %c0_90] : memref<4x8x128xf32, #tpu.memory_space<vmem>>, vector<1x8x128xf32>
      %133 = vector.shape_cast %132 : vector<1x8x128xf32> to vector<8x128xf32>
      %134 = vector.shape_cast %127 : vector<32x128xf32> to vector<4x8x128xf32>
      %cst_91 = arith.constant dense<0.000000e+00> : vector<8x128xf32>
      %135 = vector.multi_reduction <add>, %134, %cst_91 [0] : vector<4x8x128xf32> to vector<8x128xf32>
      %136 = arith.addf %133, %135 : vector<8x128xf32>
      %c3_92 = arith.constant 3 : index
      %c0_93 = arith.constant 0 : index
      %c0_94 = arith.constant 0 : index
      %137 = vector.load %arg8[%c3_92, %c0_93, %c0_94] : memref<4x8x128xf32, #tpu.memory_space<vmem>>, vector<1x8x128xf32>
      %138 = vector.shape_cast %137 : vector<1x8x128xf32> to vector<8x128xf32>
      %139 = vector.shape_cast %136 : vector<8x128xf32> to vector<1x8x128xf32>
      tpu.vector_store %arg8[%c3_92, %c0_93, %c0_94], %139 {strides = array<i32>} : memref<4x8x128xf32, #tpu.memory_space<vmem>>, vector<1x8x128xf32>,
      %c3_95 = arith.constant 3 : index
      %c0_96 = arith.constant 0 : index
      %c0_97 = arith.constant 0 : index
      %140 = vector.load %arg9[%c3_95, %c0_96, %c0_97] : memref<4x8x128xf32, #tpu.memory_space<vmem>>, vector<1x8x128xf32>
      %141 = vector.shape_cast %140 : vector<1x8x128xf32> to vector<8x128xf32>
      %142 = vector.shape_cast %130 : vector<32x128xf32> to vector<4x8x128xf32>
      %cst_98 = arith.constant dense<0.000000e+00> : vector<8x128xf32>
      %143 = vector.multi_reduction <add>, %142, %cst_98 [0] : vector<4x8x128xf32> to vector<8x128xf32>
      %144 = arith.addf %141, %143 : vector<8x128xf32>
      %c3_99 = arith.constant 3 : index
      %c0_100 = arith.constant 0 : index
      %c0_101 = arith.constant 0 : index
      %145 = vector.load %arg9[%c3_99, %c0_100, %c0_101] : memref<4x8x128xf32, #tpu.memory_space<vmem>>, vector<1x8x128xf32>
      %146 = vector.shape_cast %145 : vector<1x8x128xf32> to vector<8x128xf32>
      %147 = vector.shape_cast %144 : vector<8x128xf32> to vector<1x8x128xf32>
      tpu.vector_store %arg9[%c3_99, %c0_100, %c0_101], %147 {strides = array<i32>} : memref<4x8x128xf32, #tpu.memory_space<vmem>>, vector<1x8x128xf32>,
      %c3_102 = arith.constant 3 : index
      %c0_103 = arith.constant 0 : index
      %c0_104 = arith.constant 0 : index
      %148 = vector.load %arg10[%c3_102, %c0_103, %c0_104] : memref<4x8x128xf32, #tpu.memory_space<vmem>>, vector<1x8x128xf32>
      %149 = vector.shape_cast %148 : vector<1x8x128xf32> to vector<8x128xf32>
      %150 = vector.shape_cast %131 : vector<32x128xf32> to vector<4x8x128xf32>
      %cst_105 = arith.constant dense<0.000000e+00> : vector<8x128xf32>
      %151 = vector.multi_reduction <add>, %150, %cst_105 [0] : vector<4x8x128xf32> to vector<8x128xf32>
      %152 = arith.addf %149, %151 : vector<8x128xf32>
      %c3_106 = arith.constant 3 : index
      %c0_107 = arith.constant 0 : index
      %c0_108 = arith.constant 0 : index
      %153 = vector.load %arg10[%c3_106, %c0_107, %c0_108] : memref<4x8x128xf32, #tpu.memory_space<vmem>>, vector<1x8x128xf32>
      %154 = vector.shape_cast %153 : vector<1x8x128xf32> to vector<8x128xf32>
      %155 = vector.shape_cast %152 : vector<8x128xf32> to vector<1x8x128xf32>
      tpu.vector_store %arg10[%c3_106, %c0_107, %c0_108], %155 {strides = array<i32>} : memref<4x8x128xf32, #tpu.memory_space<vmem>>, vector<1x8x128xf32>,
    } else {
    }
    %c1_i32_4 = arith.constant 1 : i32
    %9 = arith.cmpi eq, %arg1, %c1_i32_4 : i32
    %10 = arith.extui %9 : i1 to i32
    %c0_i32_5 = arith.constant 0 : i32
    %11 = arith.cmpi ne, %10, %c0_i32_5 : i32
    scf.if %11 {
      %12 = tpu.iota {dimensions = array<i32: 2>} : vector<1x1x4xi32>
      %cst = arith.constant 0.000000e+00 : f32
      %13 = vector.broadcast %cst : f32 to vector<1x1x4xf32>
      %c0 = arith.constant 0 : index
      %c0_6 = arith.constant 0 : index
      %c0_7 = arith.constant 0 : index
      %14 = vector.load %arg8[%c0, %c0_6, %c0_7] : memref<4x8x128xf32, #tpu.memory_space<vmem>>, vector<1x8x128xf32>
      %15 = vector.shape_cast %14 : vector<1x8x128xf32> to vector<8x128xf32>
      %16 = vector.shape_cast %15 : vector<8x128xf32> to vector<1x8x128xf32>
      %cst_8 = arith.constant dense<0.000000e+00> : vector<1xf32>
      %17 = vector.multi_reduction <add>, %16, %cst_8 [1, 2] : vector<1x8x128xf32> to vector<1xf32>
      %18 = vector.shape_cast %17 : vector<1xf32> to vector<1x1x1xf32>
      %19 = vector.extract %18[0, 0, 0] : f32 from vector<1x1x1xf32>
      %c0_9 = arith.constant 0 : index
      %c0_10 = arith.constant 0 : index
      %c0_11 = arith.constant 0 : index
      %20 = vector.load %arg9[%c0_9, %c0_10, %c0_11] : memref<4x8x128xf32, #tpu.memory_space<vmem>>, vector<1x8x128xf32>
      %21 = vector.shape_cast %20 : vector<1x8x128xf32> to vector<8x128xf32>
      %22 = vector.shape_cast %21 : vector<8x128xf32> to vector<1x8x128xf32>
      %cst_12 = arith.constant dense<0.000000e+00> : vector<1xf32>
      %23 = vector.multi_reduction <add>, %22, %cst_12 [1, 2] : vector<1x8x128xf32> to vector<1xf32>
      %24 = vector.shape_cast %23 : vector<1xf32> to vector<1x1x1xf32>
      %25 = vector.extract %24[0, 0, 0] : f32 from vector<1x1x1xf32>
      %c0_13 = arith.constant 0 : index
      %c0_14 = arith.constant 0 : index
      %c0_15 = arith.constant 0 : index
      %26 = vector.load %arg10[%c0_13, %c0_14, %c0_15] : memref<4x8x128xf32, #tpu.memory_space<vmem>>, vector<1x8x128xf32>
      %27 = vector.shape_cast %26 : vector<1x8x128xf32> to vector<8x128xf32>
      %28 = vector.shape_cast %27 : vector<8x128xf32> to vector<1x8x128xf32>
      %cst_16 = arith.constant dense<0.000000e+00> : vector<1xf32>
      %29 = vector.multi_reduction <add>, %28, %cst_16 [1, 2] : vector<1x8x128xf32> to vector<1xf32>
      %30 = vector.shape_cast %29 : vector<1xf32> to vector<1x1x1xf32>
      %31 = vector.extract %30[0, 0, 0] : f32 from vector<1x1x1xf32>
      %cst_17 = arith.constant 2.000000e+00 : f32
      %32 = arith.mulf %cst_17, %31 : f32
      %cst_18 = arith.constant 9.99999997E-7 : f32
      %33 = arith.addf %32, %cst_18 : f32
      %34 = arith.addf %25, %19 : f32
      %cst_19 = arith.constant 9.99999997E-7 : f32
      %35 = arith.addf %34, %cst_19 : f32
      %36 = arith.divf %33, %35 : f32
      %c0_i32_20 = arith.constant 0 : i32
      %37 = vector.broadcast %c0_i32_20 : i32 to vector<1x1x4xi32>
      %38 = arith.cmpi eq, %12, %37 : vector<1x1x4xi32>
      %cst_21 = arith.constant 1.000000e+00 : f32
      %39 = arith.subf %cst_21, %36 : f32
      %40 = vector.broadcast %39 : f32 to vector<1x1x4xf32>
      %41 = arith.select %38, %40, %13 : vector<1x1x4xi1>, vector<1x1x4xf32>
      %c1 = arith.constant 1 : index
      %c0_22 = arith.constant 0 : index
      %c0_23 = arith.constant 0 : index
      %42 = vector.load %arg8[%c1, %c0_22, %c0_23] : memref<4x8x128xf32, #tpu.memory_space<vmem>>, vector<1x8x128xf32>
      %43 = vector.shape_cast %42 : vector<1x8x128xf32> to vector<8x128xf32>
      %44 = vector.shape_cast %43 : vector<8x128xf32> to vector<1x8x128xf32>
      %cst_24 = arith.constant dense<0.000000e+00> : vector<1xf32>
      %45 = vector.multi_reduction <add>, %44, %cst_24 [1, 2] : vector<1x8x128xf32> to vector<1xf32>
      %46 = vector.shape_cast %45 : vector<1xf32> to vector<1x1x1xf32>
      %47 = vector.extract %46[0, 0, 0] : f32 from vector<1x1x1xf32>
      %c1_25 = arith.constant 1 : index
      %c0_26 = arith.constant 0 : index
      %c0_27 = arith.constant 0 : index
      %48 = vector.load %arg9[%c1_25, %c0_26, %c0_27] : memref<4x8x128xf32, #tpu.memory_space<vmem>>, vector<1x8x128xf32>
      %49 = vector.shape_cast %48 : vector<1x8x128xf32> to vector<8x128xf32>
      %50 = vector.shape_cast %49 : vector<8x128xf32> to vector<1x8x128xf32>
      %cst_28 = arith.constant dense<0.000000e+00> : vector<1xf32>
      %51 = vector.multi_reduction <add>, %50, %cst_28 [1, 2] : vector<1x8x128xf32> to vector<1xf32>
      %52 = vector.shape_cast %51 : vector<1xf32> to vector<1x1x1xf32>
      %53 = vector.extract %52[0, 0, 0] : f32 from vector<1x1x1xf32>
      %c1_29 = arith.constant 1 : index
      %c0_30 = arith.constant 0 : index
      %c0_31 = arith.constant 0 : index
      %54 = vector.load %arg10[%c1_29, %c0_30, %c0_31] : memref<4x8x128xf32, #tpu.memory_space<vmem>>, vector<1x8x128xf32>
      %55 = vector.shape_cast %54 : vector<1x8x128xf32> to vector<8x128xf32>
      %56 = vector.shape_cast %55 : vector<8x128xf32> to vector<1x8x128xf32>
      %cst_32 = arith.constant dense<0.000000e+00> : vector<1xf32>
      %57 = vector.multi_reduction <add>, %56, %cst_32 [1, 2] : vector<1x8x128xf32> to vector<1xf32>
      %58 = vector.shape_cast %57 : vector<1xf32> to vector<1x1x1xf32>
      %59 = vector.extract %58[0, 0, 0] : f32 from vector<1x1x1xf32>
      %cst_33 = arith.constant 2.000000e+00 : f32
      %60 = arith.mulf %cst_33, %59 : f32
      %cst_34 = arith.constant 9.99999997E-7 : f32
      %61 = arith.addf %60, %cst_34 : f32
      %62 = arith.addf %53, %47 : f32
      %cst_35 = arith.constant 9.99999997E-7 : f32
      %63 = arith.addf %62, %cst_35 : f32
      %64 = arith.divf %61, %63 : f32
      %c1_i32_36 = arith.constant 1 : i32
      %65 = vector.broadcast %c1_i32_36 : i32 to vector<1x1x4xi32>
      %66 = arith.cmpi eq, %12, %65 : vector<1x1x4xi32>
      %cst_37 = arith.constant 1.000000e+00 : f32
      %67 = arith.subf %cst_37, %64 : f32
      %68 = vector.broadcast %67 : f32 to vector<1x1x4xf32>
      %69 = arith.select %66, %68, %41 : vector<1x1x4xi1>, vector<1x1x4xf32>
      %c2 = arith.constant 2 : index
      %c0_38 = arith.constant 0 : index
      %c0_39 = arith.constant 0 : index
      %70 = vector.load %arg8[%c2, %c0_38, %c0_39] : memref<4x8x128xf32, #tpu.memory_space<vmem>>, vector<1x8x128xf32>
      %71 = vector.shape_cast %70 : vector<1x8x128xf32> to vector<8x128xf32>
      %72 = vector.shape_cast %71 : vector<8x128xf32> to vector<1x8x128xf32>
      %cst_40 = arith.constant dense<0.000000e+00> : vector<1xf32>
      %73 = vector.multi_reduction <add>, %72, %cst_40 [1, 2] : vector<1x8x128xf32> to vector<1xf32>
      %74 = vector.shape_cast %73 : vector<1xf32> to vector<1x1x1xf32>
      %75 = vector.extract %74[0, 0, 0] : f32 from vector<1x1x1xf32>
      %c2_41 = arith.constant 2 : index
      %c0_42 = arith.constant 0 : index
      %c0_43 = arith.constant 0 : index
      %76 = vector.load %arg9[%c2_41, %c0_42, %c0_43] : memref<4x8x128xf32, #tpu.memory_space<vmem>>, vector<1x8x128xf32>
      %77 = vector.shape_cast %76 : vector<1x8x128xf32> to vector<8x128xf32>
      %78 = vector.shape_cast %77 : vector<8x128xf32> to vector<1x8x128xf32>
      %cst_44 = arith.constant dense<0.000000e+00> : vector<1xf32>
      %79 = vector.multi_reduction <add>, %78, %cst_44 [1, 2] : vector<1x8x128xf32> to vector<1xf32>
      %80 = vector.shape_cast %79 : vector<1xf32> to vector<1x1x1xf32>
      %81 = vector.extract %80[0, 0, 0] : f32 from vector<1x1x1xf32>
      %c2_45 = arith.constant 2 : index
      %c0_46 = arith.constant 0 : index
      %c0_47 = arith.constant 0 : index
      %82 = vector.load %arg10[%c2_45, %c0_46, %c0_47] : memref<4x8x128xf32, #tpu.memory_space<vmem>>, vector<1x8x128xf32>
      %83 = vector.shape_cast %82 : vector<1x8x128xf32> to vector<8x128xf32>
      %84 = vector.shape_cast %83 : vector<8x128xf32> to vector<1x8x128xf32>
      %cst_48 = arith.constant dense<0.000000e+00> : vector<1xf32>
      %85 = vector.multi_reduction <add>, %84, %cst_48 [1, 2] : vector<1x8x128xf32> to vector<1xf32>
      %86 = vector.shape_cast %85 : vector<1xf32> to vector<1x1x1xf32>
      %87 = vector.extract %86[0, 0, 0] : f32 from vector<1x1x1xf32>
      %cst_49 = arith.constant 2.000000e+00 : f32
      %88 = arith.mulf %cst_49, %87 : f32
      %cst_50 = arith.constant 9.99999997E-7 : f32
      %89 = arith.addf %88, %cst_50 : f32
      %90 = arith.addf %81, %75 : f32
      %cst_51 = arith.constant 9.99999997E-7 : f32
      %91 = arith.addf %90, %cst_51 : f32
      %92 = arith.divf %89, %91 : f32
      %c2_i32 = arith.constant 2 : i32
      %93 = vector.broadcast %c2_i32 : i32 to vector<1x1x4xi32>
      %94 = arith.cmpi eq, %12, %93 : vector<1x1x4xi32>
      %cst_52 = arith.constant 1.000000e+00 : f32
      %95 = arith.subf %cst_52, %92 : f32
      %96 = vector.broadcast %95 : f32 to vector<1x1x4xf32>
      %97 = arith.select %94, %96, %69 : vector<1x1x4xi1>, vector<1x1x4xf32>
      %c3 = arith.constant 3 : index
      %c0_53 = arith.constant 0 : index
      %c0_54 = arith.constant 0 : index
      %98 = vector.load %arg8[%c3, %c0_53, %c0_54] : memref<4x8x128xf32, #tpu.memory_space<vmem>>, vector<1x8x128xf32>
      %99 = vector.shape_cast %98 : vector<1x8x128xf32> to vector<8x128xf32>
      %100 = vector.shape_cast %99 : vector<8x128xf32> to vector<1x8x128xf32>
      %cst_55 = arith.constant dense<0.000000e+00> : vector<1xf32>
      %101 = vector.multi_reduction <add>, %100, %cst_55 [1, 2] : vector<1x8x128xf32> to vector<1xf32>
      %102 = vector.shape_cast %101 : vector<1xf32> to vector<1x1x1xf32>
      %103 = vector.extract %102[0, 0, 0] : f32 from vector<1x1x1xf32>
      %c3_56 = arith.constant 3 : index
      %c0_57 = arith.constant 0 : index
      %c0_58 = arith.constant 0 : index
      %104 = vector.load %arg9[%c3_56, %c0_57, %c0_58] : memref<4x8x128xf32, #tpu.memory_space<vmem>>, vector<1x8x128xf32>
      %105 = vector.shape_cast %104 : vector<1x8x128xf32> to vector<8x128xf32>
      %106 = vector.shape_cast %105 : vector<8x128xf32> to vector<1x8x128xf32>
      %cst_59 = arith.constant dense<0.000000e+00> : vector<1xf32>
      %107 = vector.multi_reduction <add>, %106, %cst_59 [1, 2] : vector<1x8x128xf32> to vector<1xf32>
      %108 = vector.shape_cast %107 : vector<1xf32> to vector<1x1x1xf32>
      %109 = vector.extract %108[0, 0, 0] : f32 from vector<1x1x1xf32>
      %c3_60 = arith.constant 3 : index
      %c0_61 = arith.constant 0 : index
      %c0_62 = arith.constant 0 : index
      %110 = vector.load %arg10[%c3_60, %c0_61, %c0_62] : memref<4x8x128xf32, #tpu.memory_space<vmem>>, vector<1x8x128xf32>
      %111 = vector.shape_cast %110 : vector<1x8x128xf32> to vector<8x128xf32>
      %112 = vector.shape_cast %111 : vector<8x128xf32> to vector<1x8x128xf32>
      %cst_63 = arith.constant dense<0.000000e+00> : vector<1xf32>
      %113 = vector.multi_reduction <add>, %112, %cst_63 [1, 2] : vector<1x8x128xf32> to vector<1xf32>
      %114 = vector.shape_cast %113 : vector<1xf32> to vector<1x1x1xf32>
      %115 = vector.extract %114[0, 0, 0] : f32 from vector<1x1x1xf32>
      %cst_64 = arith.constant 2.000000e+00 : f32
      %116 = arith.mulf %cst_64, %115 : f32
      %cst_65 = arith.constant 9.99999997E-7 : f32
      %117 = arith.addf %116, %cst_65 : f32
      %118 = arith.addf %109, %103 : f32
      %cst_66 = arith.constant 9.99999997E-7 : f32
      %119 = arith.addf %118, %cst_66 : f32
      %120 = arith.divf %117, %119 : f32
      %c3_i32 = arith.constant 3 : i32
      %121 = vector.broadcast %c3_i32 : i32 to vector<1x1x4xi32>
      %122 = arith.cmpi eq, %12, %121 : vector<1x1x4xi32>
      %cst_67 = arith.constant 1.000000e+00 : f32
      %123 = arith.subf %cst_67, %120 : f32
      %124 = vector.broadcast %123 : f32 to vector<1x1x4xf32>
      %125 = arith.select %122, %124, %97 : vector<1x1x4xi1>, vector<1x1x4xf32>
      %c0_68 = arith.constant 0 : index
      %c0_69 = arith.constant 0 : index
      %c0_70 = arith.constant 0 : index
      %126 = vector.load %arg7[%c0_68, %c0_69, %c0_70] : memref<1x1x4xf32, #tpu.memory_space<vmem>>, vector<1x1x4xf32>
      tpu.vector_store %arg7[%c0_68, %c0_69, %c0_70], %125 {strides = array<i32>} : memref<1x1x4xf32, #tpu.memory_space<vmem>>, vector<1x1x4xf32>,
    } else {
    }
    return
  }
  func.func @transform_0(%arg0: i32, %arg1: i32) -> (i32, i32, i32) {
    %c0_i32 = arith.constant 0 : i32
    %c0_i32_0 = arith.constant 0 : i32
    return %arg0, %arg1, %c0_i32 : i32, i32, i32
  }
  func.func @transform_1(%arg0: i32, %arg1: i32) -> (i32, i32, i32, i32) {
    %c1_i32 = arith.constant 1 : i32
    %c0_i32 = arith.constant 0 : i32
    %c0_i32_0 = arith.constant 0 : i32
    return %arg0, %c1_i32, %arg1, %c0_i32 : i32, i32, i32, i32
  }
  func.func @transform_2(%arg0: i32, %arg1: i32) -> (i32, i32, i32, i32) {
    %c2_i32 = arith.constant 2 : i32
    %c0_i32 = arith.constant 0 : i32
    %c0_i32_0 = arith.constant 0 : i32
    return %arg0, %c2_i32, %arg1, %c0_i32 : i32, i32, i32, i32
  }
  func.func @transform_3(%arg0: i32, %arg1: i32) -> (i32, i32, i32, i32) {
    %c3_i32 = arith.constant 3 : i32
    %c0_i32 = arith.constant 0 : i32
    %c0_i32_0 = arith.constant 0 : i32
    return %arg0, %c3_i32, %arg1, %c0_i32 : i32, i32, i32, i32
  }
  func.func @transform_4(%arg0: i32, %arg1: i32) -> (i32, i32, i32, i32) {
    %c4_i32 = arith.constant 4 : i32
    %c0_i32 = arith.constant 0 : i32
    %c0_i32_0 = arith.constant 0 : i32
    return %arg0, %c4_i32, %arg1, %c0_i32 : i32, i32, i32, i32
  }
  func.func @transform_5(%arg0: i32, %arg1: i32) -> (i32, i32, i32) {
    %c0_i32 = arith.constant 0 : i32
    %c0_i32_0 = arith.constant 0 : i32
    %c0_i32_1 = arith.constant 0 : i32
    return %arg0, %c0_i32, %c0_i32_0 : i32, i32, i32
  }
}

</mosaic_0001>

<llo_original>
// kernel: tpu_custom_call.1
$region0: #{tpu_custom_call.1}
  #allocation0 [shape = 'u32[]', space=smem, size = 0x4, offset = 0x4, fixed_abs, tag = 'smem constant byte address 0x4 - core index']
  #allocation1 [shape = 'u32[144,128]{1,0:T(1,128)}', space=vmem, size = 0x12000, scoped, tag = 'internal scratch']
  #allocation2 [shape = 'f32[4,8,128]{2,1,0:T(8,128)}', space=vmem, size = 0x4000, scoped, tag = 'scratch operand']
  #allocation3 [shape = 'f32[4,8,128]{2,1,0:T(8,128)}', space=vmem, size = 0x4000, scoped, tag = 'scratch operand']
  #allocation4 [shape = 'f32[4,8,128]{2,1,0:T(8,128)}', space=vmem, size = 0x4000, scoped, tag = 'scratch operand']
  %s0 = inlined_call_operand.hbm [shape: s32[2,48,128], index: 0, kind: input, shape index: {}]
  %s1 = inlined_call_operand.hbm [shape: f32[2,5,48,128], index: 1, kind: input, shape index: {}]
  %s2 = inlined_call_operand.hbm [shape: f32[2,5,48,128], index: 2, kind: input, shape index: {}]
  %s3 = inlined_call_operand.hbm [shape: f32[2,5,48,128], index: 3, kind: input, shape index: {}]
  %s4 = inlined_call_operand.hbm [shape: f32[2,5,48,128], index: 4, kind: input, shape index: {}]
  %s5 = inlined_call_operand.hbm [shape: f32[2,1,4], index: 5, kind: output, shape index: {}]
  %s6 = sld [smem:[#allocation0]]
  $region85: #{tpu_custom_call.1} parent=0
    _
  %s8 = ssub.s32 1, %s6
  %s9 = scalar_select 0, %s8, %s6
  $region1: #{tpu_custom_call.1} parent=0
    #allocation5 [shape = 'u8[32768]{0}', space=vmem, size = 0x8000, scoped, tag = 'input window, operand 0']
    #allocation6 [shape = 's32[2]{0}', space=sflag, size = 0x8, scoped, tag = 'scoped memory for tpu_custom_call.1']
    #allocation7 [shape = 's32[2]{0}', space=sflag, size = 0x8, scoped, tag = 'scoped memory for tpu_custom_call.1']
    #allocation8 [shape = 'u8[32768]{0}', space=vmem, size = 0x8000, scoped, tag = 'input window, operand 1']
    #allocation9 [shape = 's32[2]{0}', space=sflag, size = 0x8, scoped, tag = 'scoped memory for tpu_custom_call.1']
    #allocation10 [shape = 'u8[32768]{0}', space=vmem, size = 0x8000, scoped, tag = 'input window, operand 2']
    #allocation11 [shape = 'u8[32768]{0}', space=vmem, size = 0x8000, scoped, tag = 'input window, operand 3']
    #allocation12 [shape = 's32[2]{0}', space=sflag, size = 0x8, scoped, tag = 'scoped memory for tpu_custom_call.1']
    #allocation13 [shape = 'u8[32768]{0}', space=vmem, size = 0x8000, scoped, tag = 'input window, operand 4']
    #allocation14 [shape = 'u8[1024]{0}', space=vmem, size = 0x400, scoped, tag = 'output window, operand 0']
    %10 = vsyncpa [#allocation6], 0
    %s11 = scalar_lea.sflag [#allocation6], 1
    %12 = vsyncpa %s11, 0
    %13 = vsyncpa [#allocation9], 0
    %s14 = scalar_lea.sflag [#allocation9], 1
    %15 = vsyncpa %s14, 0
    %16 = vsyncpa [#allocation12], 0
    %s17 = scalar_lea.sflag [#allocation12], 1
    %18 = vsyncpa %s17, 0
    %19 = vsyncpa [#allocation7], 0
    %s20 = scalar_lea.sflag [#allocation7], 1
    %21 = vsyncpa %s20, 0
    loop: start=0, step=1, limit=6
    $region2: #{tpu_custom_call.1} parent=1 // loop_pre_header
      _
    $region3: #{tpu_custom_call.1} parent=1 // loop_header
      %s23 = sphi 0, %s27
      %p24 = scmp.ge.s32.totalorder %s23, 6
      %s30 = sphi 0, %s42
      %s31 = sphi 0, %s38
      %s32 = sphi 0, %s30
      %s33 = sphi 0, %s31
      %s34 = sphi 0, %s32
      %s35 = sphi 0, %s33
      %s47 = sphi 0, %s49
      %s50 = sphi 0, %s47
      %s51 = sphi 0, %s50
      %s67 = sphi 0, %s51
      %s75 = sphi 0, %s77
      %s78 = sphi 0, %s75
      %s79 = sphi 0, %s78
      %s95 = sphi 0, %s79
      %s103 = sphi 0, %s105
      %s106 = sphi 0, %s103
      %s107 = sphi 0, %s106
      %s123 = sphi 0, %s107
      %s131 = sphi 0, %s133
      %s134 = sphi 0, %s131
      %s135 = sphi 0, %s134
      %s151 = sphi 0, %s135
      %s159 = sphi 0, %s161
      %s162 = sphi 0, %s159
      %s163 = sphi 0, %s162
      %s179 = sphi 0, %s163
      %s185 = sphi 0, %s187
      %s188 = sphi 0, %s185
      %s189 = sphi 0, %s188
      %s205 = sphi 0, %s189
    $region4: #{tpu_custom_call.1} parent=1 // loop_header_branch
      %26 = sbr.rel (%p24) target = $region8
    $region5: #{tpu_custom_call.1} parent=1 // loop_body
      %s28 = ssub.s32 %s23, 1
      %s29 = ssub.s32 %s23, 2
      %s36 = sadd.s32 1, %s31
      %p37 = scmp.ge.s32.totalorder %s36, 2
      %s38 = scalar_select %p37, 0, %s36
      %s39 = sadd.s32 1, %s30
      %s40 = scalar_select %p37, %s39, %s30
      %p41 = scmp.ge.s32.totalorder %s40, 2
      %s42 = scalar_select %p41, 0, %s40
      %s43 = ssub.s32 %s30, %s42
      %s44 = ssub.s32 %s31, %s38
      %s45 = sor.u32 %s43, %s44
      %p46 = scmp.eq.s32.totalorder %s45, 0
      %s48 = sadd.s32 %s47, 1
      %s49 = scalar_select %p46, %s47, %s48
      %p52 = pneg %p46
      %p53 = scmp.eq.s32.totalorder %s23, 3
      %p54 = por %p52, %p53
      %p55 = scmp.ne.s32.totalorder %s47, %s50
      %p56 = scmp.eq.s32.totalorder %s23, 0
      %p57 = por %p55, %p56
      %p58 = scmp.ne.s32.totalorder %s47, %s50
      %p59 = scmp.eq.s32.totalorder %s28, 3
      %p60 = por %p58, %p59
      %p61 = scmp.ne.s32.totalorder %s50, %s51
      %p62 = scmp.eq.s32.totalorder %s28, 0
      %p63 = por %p61, %p62
      %p64 = scmp.ne.s32.totalorder %s50, %s51
      %p65 = scmp.eq.s32.totalorder %s29, 3
      %p66 = por %p64, %p65
      %p68 = scmp.ne.s32.totalorder %s51, %s67
      %p69 = scmp.eq.s32.totalorder %s29, 0
      %p70 = por %p68, %p69
      %s71 = ssub.s32 %s30, %s42
      %s72 = ssub.s32 %s31, %s38
      %s73 = sor.u32 %s71, %s72
      %p74 = scmp.eq.s32.totalorder %s73, 0
      %s76 = sadd.s32 %s75, 1
      %s77 = scalar_select %p74, %s75, %s76
      %p80 = pneg %p74
      %p81 = scmp.eq.s32.totalorder %s23, 3
      %p82 = por %p80, %p81
      %p83 = scmp.ne.s32.totalorder %s75, %s78
      %p84 = scmp.eq.s32.totalorder %s23, 0
      %p85 = por %p83, %p84
      %p86 = scmp.ne.s32.totalorder %s75, %s78
      %p87 = scmp.eq.s32.totalorder %s28, 3
      %p88 = por %p86, %p87
      %p89 = scmp.ne.s32.totalorder %s78, %s79
      %p90 = scmp.eq.s32.totalorder %s28, 0
      %p91 = por %p89, %p90
      %p92 = scmp.ne.s32.totalorder %s78, %s79
      %p93 = scmp.eq.s32.totalorder %s29, 3
      %p94 = por %p92, %p93
      %p96 = scmp.ne.s32.totalorder %s79, %s95
      %p97 = scmp.eq.s32.totalorder %s29, 0
      %p98 = por %p96, %p97
      %s99 = ssub.s32 %s30, %s42
      %s100 = ssub.s32 %s31, %s38
      %s101 = sor.u32 %s99, %s100
      %p102 = scmp.eq.s32.totalorder %s101, 0
      %s104 = sadd.s32 %s103, 1
      %s105 = scalar_select %p102, %s103, %s104
      %p108 = pneg %p102
      %p109 = scmp.eq.s32.totalorder %s23, 3
      %p110 = por %p108, %p109
      %p111 = scmp.ne.s32.totalorder %s103, %s106
      %p112 = scmp.eq.s32.totalorder %s23, 0
      %p113 = por %p111, %p112
      %p114 = scmp.ne.s32.totalorder %s103, %s106
      %p115 = scmp.eq.s32.totalorder %s28, 3
      %p116 = por %p114, %p115
      %p117 = scmp.ne.s32.totalorder %s106, %s107
      %p118 = scmp.eq.s32.totalorder %s28, 0
      %p119 = por %p117, %p118
      %p120 = scmp.ne.s32.totalorder %s106, %s107
      %p121 = scmp.eq.s32.totalorder %s29, 3
      %p122 = por %p120, %p121
      %p124 = scmp.ne.s32.totalorder %s107, %s123
      %p125 = scmp.eq.s32.totalorder %s29, 0
      %p126 = por %p124, %p125
      %s127 = ssub.s32 %s30, %s42
      %s128 = ssub.s32 %s31, %s38
      %s129 = sor.u32 %s127, %s128
      %p130 = scmp.eq.s32.totalorder %s129, 0
      %s132 = sadd.s32 %s131, 1
      %s133 = scalar_select %p130, %s131, %s132
      %p136 = pneg %p130
      %p137 = scmp.eq.s32.totalorder %s23, 3
      %p138 = por %p136, %p137
      %p139 = scmp.ne.s32.totalorder %s131, %s134
      %p140 = scmp.eq.s32.totalorder %s23, 0
      %p141 = por %p139, %p140
      %p142 = scmp.ne.s32.totalorder %s131, %s134
      %p143 = scmp.eq.s32.totalorder %s28, 3
      %p144 = por %p142, %p143
      %p145 = scmp.ne.s32.totalorder %s134, %s135
      %p146 = scmp.eq.s32.totalorder %s28, 0
      %p147 = por %p145, %p146
      %p148 = scmp.ne.s32.totalorder %s134, %s135
      %p149 = scmp.eq.s32.totalorder %s29, 3
      %p150 = por %p148, %p149
      %p152 = scmp.ne.s32.totalorder %s135, %s151
      %p153 = scmp.eq.s32.totalorder %s29, 0
      %p154 = por %p152, %p153
      %s155 = ssub.s32 %s30, %s42
      %s156 = ssub.s32 %s31, %s38
      %s157 = sor.u32 %s155, %s156
      %p158 = scmp.eq.s32.totalorder %s157, 0
      %s160 = sadd.s32 %s159, 1
      %s161 = scalar_select %p158, %s159, %s160
      %p164 = pneg %p158
      %p165 = scmp.eq.s32.totalorder %s23, 3
      %p166 = por %p164, %p165
      %p167 = scmp.ne.s32.totalorder %s159, %s162
      %p168 = scmp.eq.s32.totalorder %s23, 0
      %p169 = por %p167, %p168
      %p170 = scmp.ne.s32.totalorder %s159, %s162
      %p171 = scmp.eq.s32.totalorder %s28, 3
      %p172 = por %p170, %p171
      %p173 = scmp.ne.s32.totalorder %s162, %s163
      %p174 = scmp.eq.s32.totalorder %s28, 0
      %p175 = por %p173, %p174
      %p176 = scmp.ne.s32.totalorder %s162, %s163
      %p177 = scmp.eq.s32.totalorder %s29, 3
      %p178 = por %p176, %p177
      %p180 = scmp.ne.s32.totalorder %s163, %s179
      %p181 = scmp.eq.s32.totalorder %s29, 0
      %p182 = por %p180, %p181
      %s183 = ssub.s32 %s30, %s42
      %p184 = scmp.eq.s32.totalorder %s183, 0
      %s186 = sadd.s32 %s185, 1
      %s187 = scalar_select %p184, %s185, %s186
      %p190 = pneg %p184
      %p191 = scmp.eq.s32.totalorder %s23, 3
      %p192 = por %p190, %p191
      %p193 = scmp.ne.s32.totalorder %s185, %s188
      %p194 = scmp.eq.s32.totalorder %s23, 0
      %p195 = por %p193, %p194
      %p196 = scmp.ne.s32.totalorder %s185, %s188
      %p197 = scmp.eq.s32.totalorder %s28, 3
      %p198 = por %p196, %p197
      %p199 = scmp.ne.s32.totalorder %s188, %s189
      %p200 = scmp.eq.s32.totalorder %s28, 0
      %p201 = por %p199, %p200
      %p202 = scmp.ne.s32.totalorder %s188, %s189
      %p203 = scmp.eq.s32.totalorder %s29, 3
      %p204 = por %p202, %p203
      %p206 = scmp.ne.s32.totalorder %s189, %s205
      %p207 = scmp.eq.s32.totalorder %s29, 0
      %p208 = por %p206, %p207
      %p209 = scmp.le.s32.totalorder 1, %s23
      %p210 = scmp.lt.s32.totalorder %s23, 5
      %p211 = pnand %p209, %p210
      %p212 = pneg %p211
      // Predicated region
      $region9: #{tpu_custom_call.1} parent=5 // pred_check
        _
      $region10: #{tpu_custom_call.1} parent=5 // pred_check_branch
        %214 = sbr.rel (%p211) target = $region12
      $region11: #{tpu_custom_call.1} parent=5 // pred_region
        %s215 = ssub.s32 %s23, 1
      $region12: #{tpu_custom_call.1} parent=5 // pred_fallthru
        _
      %p216 = scmp.lt.s32.totalorder %s23, 4
      // Predicated region
      $region13: #{tpu_custom_call.1} parent=5 // pred_check
        %p217 = pneg %p216
      $region14: #{tpu_custom_call.1} parent=5 // pred_check_branch
        %219 = sbr.rel (%p217) target = $region16
      $region15: #{tpu_custom_call.1} parent=5 // pred_region
        // Predicated region
        $region17: #{tpu_custom_call.1} parent=15 // pred_check
          %p220 = pneg %p57
        $region18: #{tpu_custom_call.1} parent=15 // pred_check_branch
          %222 = sbr.rel (%p220) target = $region20
        $region19: #{tpu_custom_call.1} parent=15 // pred_region
          %s223 = sand.u32 %s47, 1
          %s224 = scalar_lea.sflag [#allocation6], %s223
          %s225 = sand.u32 %s47, 1
          %s226 = smul.addr %s225, 32
          %s227 = scalar_lea.vmem [#allocation5], %s226
          %s228 = smul.u32 4, %s31
          %s229 = ssub.s32 6, %s228
          %p230 = scmp.lt.s32.totalorder %s229, 4
          %s231 = scalar_select %p230, %s229, 4
          %s232 = smul.u32 128, %s231
          %s234 = ssub.s32 512, %s232
          %235 = vsyncadd %s224, %s234
          %p236 = scmp.ne.s32.totalorder 0, %s232
          %s237 = smul.addr %s30, 6
          %s238 = sadd.s32 %s228, %s237
          %s239 = smul.addr %s238, 128
          %s240 = scalar_lea.hbm %s0, %s239
          %s241 = smul.u32 8, %s231
          %s242 = sshll.u32 %s227, 4
          %s243 = int_to_ptr.vmem [resolvable:$true] %s242
          %s244 = sshll.u32 %s241, 4
          %248 = dma.hbm_to_vmem [thread:$0]  (%p236), %s240, %s244, %s243, %s224, 128, 128, 8
        $region20: #{tpu_custom_call.1} parent=15 // pred_fallthru
          _
        // Predicated region
        $region21: #{tpu_custom_call.1} parent=15 // pred_check
          %p249 = pneg %p85
        $region22: #{tpu_custom_call.1} parent=15 // pred_check_branch
          %251 = sbr.rel (%p249) target = $region24
        $region23: #{tpu_custom_call.1} parent=15 // pred_region
          %s252 = sand.u32 %s23, 1
          %s253 = scalar_lea.sflag [#allocation9], %s252
          %s254 = sand.u32 %s75, 1
          %s255 = smul.addr %s254, 32
          %s256 = scalar_lea.vmem [#allocation8], %s255
          %s257 = smul.u32 4, %s31
          %s258 = ssub.s32 6, %s257
          %p259 = scmp.lt.s32.totalorder %s258, 4
          %s260 = scalar_select %p259, %s258, 4
          %s261 = smul.u32 128, %s260
          %s263 = ssub.s32 512, %s261
          %264 = vsyncadd %s253, %s263
          %p265 = scmp.ne.s32.totalorder 0, %s261
          %s266 = sadd.s32 %s257, 6
          %s267 = smul.addr %s30, 30
          %s268 = sadd.s32 %s266, %s267
          %s269 = smul.addr %s268, 128
          %s270 = scalar_lea.hbm %s1, %s269
          %s271 = smul.u32 8, %s260
          %s272 = sshll.u32 %s256, 4
          %s273 = int_to_ptr.vmem [resolvable:$true] %s272
          %s274 = sshll.u32 %s271, 4
          %278 = dma.hbm_to_vmem [thread:$0]  (%p265), %s270, %s274, %s273, %s253, 128, 128, 8
        $region24: #{tpu_custom_call.1} parent=15 // pred_fallthru
          _
        // Predicated region
        $region25: #{tpu_custom_call.1} parent=15 // pred_check
          %p279 = pneg %p113
        $region26: #{tpu_custom_call.1} parent=15 // pred_check_branch
          %281 = sbr.rel (%p279) target = $region28
        $region27: #{tpu_custom_call.1} parent=15 // pred_region
          %s282 = sand.u32 %s23, 1
          %s283 = scalar_lea.sflag [#allocation9], %s282
          %s284 = sand.u32 %s103, 1
          %s285 = smul.addr %s284, 32
          %s286 = scalar_lea.vmem [#allocation10], %s285
          %s287 = smul.u32 4, %s31
          %s288 = ssub.s32 6, %s287
          %p289 = scmp.lt.s32.totalorder %s288, 4
          %s290 = scalar_select %p289, %s288, 4
          %s291 = smul.u32 128, %s290
          %s293 = ssub.s32 512, %s291
          %294 = vsyncadd %s283, %s293
          %p295 = scmp.ne.s32.totalorder 0, %s291
          %s296 = sadd.s32 %s287, 12
          %s297 = smul.addr %s30, 30
          %s298 = sadd.s32 %s296, %s297
          %s299 = smul.addr %s298, 128
          %s300 = scalar_lea.hbm %s2, %s299
          %s301 = smul.u32 8, %s290
          %s302 = sshll.u32 %s286, 4
          %s303 = int_to_ptr.vmem [resolvable:$true] %s302
          %s304 = sshll.u32 %s301, 4
          %308 = dma.hbm_to_vmem [thread:$0]  (%p295), %s300, %s304, %s303, %s283, 128, 128, 8
        $region28: #{tpu_custom_call.1} parent=15 // pred_fallthru
          _
        // Predicated region
        $region29: #{tpu_custom_call.1} parent=15 // pred_check
          %p309 = pneg %p141
        $region30: #{tpu_custom_call.1} parent=15 // pred_check_branch
          %311 = sbr.rel (%p309) target = $region32
        $region31: #{tpu_custom_call.1} parent=15 // pred_region
          %s312 = sand.u32 %s23, 1
          %s313 = scalar_lea.sflag [#allocation12], %s312
          %s314 = sand.u32 %s131, 1
          %s315 = smul.addr %s314, 32
          %s316 = scalar_lea.vmem [#allocation11], %s315
          %s317 = smul.u32 4, %s31
          %s318 = ssub.s32 6, %s317
          %p319 = scmp.lt.s32.totalorder %s318, 4
          %s320 = scalar_select %p319, %s318, 4
          %s321 = smul.u32 128, %s320
          %s323 = ssub.s32 512, %s321
          %324 = vsyncadd %s313, %s323
          %p325 = scmp.ne.s32.totalorder 0, %s321
          %s326 = sadd.s32 %s317, 18
          %s327 = smul.addr %s30, 30
          %s328 = sadd.s32 %s326, %s327
          %s329 = smul.addr %s328, 128
          %s330 = scalar_lea.hbm %s3, %s329
          %s331 = smul.u32 8, %s320
          %s332 = sshll.u32 %s316, 4
          %s333 = int_to_ptr.vmem [resolvable:$true] %s332
          %s334 = sshll.u32 %s331, 4
          %338 = dma.hbm_to_vmem [thread:$0]  (%p325), %s330, %s334, %s333, %s313, 128, 128, 8
        $region32: #{tpu_custom_call.1} parent=15 // pred_fallthru
          _
        // Predicated region
        $region33: #{tpu_custom_call.1} parent=15 // pred_check
          %p339 = pneg %p169
        $region34: #{tpu_custom_call.1} parent=15 // pred_check_branch
          %341 = sbr.rel (%p339) target = $region36
        $region35: #{tpu_custom_call.1} parent=15 // pred_region
          %s342 = sand.u32 %s23, 1
          %s343 = scalar_lea.sflag [#allocation12], %s342
          %s344 = sand.u32 %s159, 1
          %s345 = smul.addr %s344, 32
          %s346 = scalar_lea.vmem [#allocation13], %s345
          %s347 = smul.u32 4, %s31
          %s348 = ssub.s32 6, %s347
          %p349 = scmp.lt.s32.totalorder %s348, 4
          %s350 = scalar_select %p349, %s348, 4
          %s351 = smul.u32 128, %s350
          %s353 = ssub.s32 512, %s351
          %354 = vsyncadd %s343, %s353
          %p355 = scmp.ne.s32.totalorder 0, %s351
          %s356 = sadd.s32 %s347, 24
          %s357 = smul.addr %s30, 30
          %s358 = sadd.s32 %s356, %s357
          %s359 = smul.addr %s358, 128
          %s360 = scalar_lea.hbm %s4, %s359
          %s361 = smul.u32 8, %s350
          %s362 = sshll.u32 %s346, 4
          %s363 = int_to_ptr.vmem [resolvable:$true] %s362
          %s364 = sshll.u32 %s361, 4
          %368 = dma.hbm_to_vmem [thread:$0]  (%p355), %s360, %s364, %s363, %s343, 128, 128, 8
        $region36: #{tpu_custom_call.1} parent=15 // pred_fallthru
          _
      $region16: #{tpu_custom_call.1} parent=5 // pred_fallthru
        _
      %p369 = scmp.le.s32.totalorder 1, %s23
      %p370 = scmp.lt.s32.totalorder %s23, 5
      %p371 = pnand %p369, %p370
      %p372 = pneg %p371
      // Predicated region
      $region37: #{tpu_custom_call.1} parent=5 // pred_check
        _
      $region38: #{tpu_custom_call.1} parent=5 // pred_check_branch
        %374 = sbr.rel (%p371) target = $region40
      $region39: #{tpu_custom_call.1} parent=5 // pred_region
        %s375 = ssub.s32 %s23, 1
        %s376 = sand.u32 %s50, 1
        %s377 = scalar_lea.sflag [#allocation6], %s376
        %s378 = sand.u32 %s50, 1
        %s379 = smul.addr %s378, 32
        %s380 = scalar_lea.vmem [#allocation5], %s379
        // Predicated region
        $region41: #{tpu_custom_call.1} parent=39 // pred_check
          %p381 = pneg %p63
        $region42: #{tpu_custom_call.1} parent=39 // pred_check_branch
          %383 = sbr.rel (%p381) target = $region44
        $region43: #{tpu_custom_call.1} parent=39 // pred_region
          %384 = dma.done %s377, 512
        $region44: #{tpu_custom_call.1} parent=39 // pred_fallthru
          _
        %s385 = sand.u32 %s28, 1
        %s386 = scalar_lea.sflag [#allocation9], %s385
        %s387 = sand.u32 %s78, 1
        %s388 = smul.addr %s387, 32
        %s389 = scalar_lea.vmem [#allocation8], %s388
        // Predicated region
        $region45: #{tpu_custom_call.1} parent=39 // pred_check
          %p390 = pneg %p91
        $region46: #{tpu_custom_call.1} parent=39 // pred_check_branch
          %392 = sbr.rel (%p390) target = $region48
        $region47: #{tpu_custom_call.1} parent=39 // pred_region
          %393 = dma.done %s386, 512
        $region48: #{tpu_custom_call.1} parent=39 // pred_fallthru
          _
        %s394 = sand.u32 %s28, 1
        %s395 = scalar_lea.sflag [#allocation9], %s394
        %s396 = sand.u32 %s106, 1
        %s397 = smul.addr %s396, 32
        %s398 = scalar_lea.vmem [#allocation10], %s397
        // Predicated region
        $region49: #{tpu_custom_call.1} parent=39 // pred_check
          %p399 = pneg %p119
        $region50: #{tpu_custom_call.1} parent=39 // pred_check_branch
          %401 = sbr.rel (%p399) target = $region52
        $region51: #{tpu_custom_call.1} parent=39 // pred_region
          %402 = dma.done %s395, 512
        $region52: #{tpu_custom_call.1} parent=39 // pred_fallthru
          _
        %s403 = sand.u32 %s28, 1
        %s404 = scalar_lea.sflag [#allocation12], %s403
        %s405 = sand.u32 %s134, 1
        %s406 = smul.addr %s405, 32
        %s407 = scalar_lea.vmem [#allocation11], %s406
        // Predicated region
        $region53: #{tpu_custom_call.1} parent=39 // pred_check
          %p408 = pneg %p147
        $region54: #{tpu_custom_call.1} parent=39 // pred_check_branch
          %410 = sbr.rel (%p408) target = $region56
        $region55: #{tpu_custom_call.1} parent=39 // pred_region
          %411 = dma.done %s404, 512
        $region56: #{tpu_custom_call.1} parent=39 // pred_fallthru
          _
        %s412 = sand.u32 %s28, 1
        %s413 = scalar_lea.sflag [#allocation12], %s412
        %s414 = sand.u32 %s162, 1
        %s415 = smul.addr %s414, 32
        %s416 = scalar_lea.vmem [#allocation13], %s415
        // Predicated region
        $region57: #{tpu_custom_call.1} parent=39 // pred_check
          %p417 = pneg %p175
        $region58: #{tpu_custom_call.1} parent=39 // pred_check_branch
          %419 = sbr.rel (%p417) target = $region60
        $region59: #{tpu_custom_call.1} parent=39 // pred_region
          %420 = dma.done %s413, 512
        $region60: #{tpu_custom_call.1} parent=39 // pred_fallthru
          _
        %s421 = sand.u32 %s50, 1
        %s422 = scalar_lea.sflag [#allocation6], %s421
        %s423 = sand.u32 %s50, 1
        %s424 = smul.addr %s423, 32
        %s425 = scalar_lea.vmem [#allocation5], %s424
        %p426 = pneg %p63
        %p427 = pneg %p60
        %s428 = sand.u32 %s28, 1
        %s429 = scalar_lea.sflag [#allocation9], %s428
        %s430 = sand.u32 %s78, 1
        %s431 = smul.addr %s430, 32
        %s432 = scalar_lea.vmem [#allocation8], %s431
        %p433 = pneg %p91
        %p434 = pneg %p88
        %s435 = sand.u32 %s28, 1
        %s436 = scalar_lea.sflag [#allocation9], %s435
        %s437 = sand.u32 %s106, 1
        %s438 = smul.addr %s437, 32
        %s439 = scalar_lea.vmem [#allocation10], %s438
        %p440 = pneg %p119
        %p441 = pneg %p116
        %s442 = sand.u32 %s28, 1
        %s443 = scalar_lea.sflag [#allocation12], %s442
        %s444 = sand.u32 %s134, 1
        %s445 = smul.addr %s444, 32
        %s446 = scalar_lea.vmem [#allocation11], %s445
        %p447 = pneg %p147
        %p448 = pneg %p144
        %s449 = sand.u32 %s28, 1
        %s450 = scalar_lea.sflag [#allocation12], %s449
        %s451 = sand.u32 %s162, 1
        %s452 = smul.addr %s451, 32
        %s453 = scalar_lea.vmem [#allocation13], %s452
        %p454 = pneg %p175
        %p455 = pneg %p172
        %p456 = pneg %p201
        %p457 = pneg %p198
        %s458 = sand.u32 %s188, 1
        %s459 = scalar_lea.sflag [#allocation7], %s458
        %s460 = sand.u32 %s188, 1
        %s461 = scalar_lea.vmem [#allocation14], %s460
        %s462 = smul.u32 4, %s33
        %s463 = ssub.s32 6, %s462
        %p464 = scmp.lt.s32.totalorder %s463, 4
        %s465 = scalar_select %p464, %s463, 4
        %s466 = smul.u32 128, %s465
        %s467 = smul.u32 4, %s33
        %s468 = ssub.s32 6, %s467
        %p469 = scmp.lt.s32.totalorder %s468, 4
        %s470 = scalar_select %p469, %s468, 4
        %s471 = smul.u32 128, %s470
        %s472 = smul.u32 4, %s33
        %s473 = ssub.s32 6, %s472
        %p474 = scmp.lt.s32.totalorder %s473, 4
        %s475 = scalar_select %p474, %s473, 4
        %s476 = smul.u32 128, %s475
        %s477 = smul.u32 4, %s33
        %s478 = ssub.s32 6, %s477
        %p479 = scmp.lt.s32.totalorder %s478, 4
        %s480 = scalar_select %p479, %s478, 4
        %s481 = smul.u32 128, %s480
        %s482 = smul.u32 4, %s33
        %s483 = ssub.s32 6, %s482
        %p484 = scmp.lt.s32.totalorder %s483, 4
        %s485 = scalar_select %p484, %s483, 4
        %s486 = smul.u32 128, %s485
        %p487 = scmp.eq.s32.totalorder %s33, 0
        // Predicated region
        $region61: #{tpu_custom_call.1} parent=39 // pred_check
          %p488 = pneg %p487
        $region62: #{tpu_custom_call.1} parent=39 // pred_check_branch
          %490 = sbr.rel (%p488) target = $region64
        $region63: #{tpu_custom_call.1} parent=39 // pred_region
          %491 = vst [vmem:[#allocation2] sm:$0xff] 0.0
          %492 = vst [vmem:[#allocation2 + $0x8] sm:$0xff] 0.0
          %493 = vst [vmem:[#allocation2 + $0x10] sm:$0xff] 0.0
          %494 = vst [vmem:[#allocation2 + $0x18] sm:$0xff] 0.0
          %495 = vst [vmem:[#allocation3] sm:$0xff] 0.0
          %496 = vst [vmem:[#allocation3 + $0x8] sm:$0xff] 0.0
          %497 = vst [vmem:[#allocation3 + $0x10] sm:$0xff] 0.0
          %498 = vst [vmem:[#allocation3 + $0x18] sm:$0xff] 0.0
          %499 = vst [vmem:[#allocation4] sm:$0xff] 0.0
          %500 = vst [vmem:[#allocation4 + $0x8] sm:$0xff] 0.0
          %501 = vst [vmem:[#allocation4 + $0x10] sm:$0xff] 0.0
          %502 = vst [vmem:[#allocation4 + $0x18] sm:$0xff] 0.0
        $region64: #{tpu_custom_call.1} parent=39 // pred_fallthru
          _
        %p503 = scmp.lt.s32.totalorder %s33, 1
        // Predicated region
        $region65: #{tpu_custom_call.1} parent=39 // pred_check
          %p504 = pneg %p503
        $region66: #{tpu_custom_call.1} parent=39 // pred_check_branch
          %506 = sbr.rel (%p504) target = $region68
        $region67: #{tpu_custom_call.1} parent=39 // pred_region
          %v507 = vld [vmem:[%s380] sm:$0xff]
          %v508 = vld [vmem:[%s380 + $0x8] sm:$0xff]
          %v509 = vld [vmem:[%s380 + $0x10] sm:$0xff]
          %v510 = vld [vmem:[%s380 + $0x18] sm:$0xff]
          %v511 = vld [vmem:[%s389] sm:$0xff]
          %v512 = vld [vmem:[%s389 + $0x8] sm:$0xff]
          %v513 = vld [vmem:[%s389 + $0x10] sm:$0xff]
          %v514 = vld [vmem:[%s389 + $0x18] sm:$0xff]
          %vm515 = vcmp.eq.s32.totalorder %v507, 1
          %vm516 = vcmp.eq.s32.totalorder %v508, 1
          %vm517 = vcmp.eq.s32.totalorder %v509, 1
          %vm518 = vcmp.eq.s32.totalorder %v510, 1
          %v519 = vsel %vm515, 1, 0
          %v520 = vsel %vm516, 1, 0
          %v521 = vsel %vm517, 1, 0
          %v522 = vsel %vm518, 1, 0
          %v523 = vcvt.s32.f32 %v519
          %v524 = vcvt.s32.f32 %v520
          %v525 = vcvt.s32.f32 %v521
          %v526 = vcvt.s32.f32 %v522
          %v527 = vmul.f32 %v511, %v523
          %v528 = vmul.f32 %v512, %v524
          %v529 = vmul.f32 %v513, %v525
          %v530 = vmul.f32 %v514, %v526
          %v531 = vld [vmem:[#allocation2] sm:$0xff]
          %v532 = vadd.f32 %v511, %v512
          %v533 = vadd.f32 %v532, %v513
          %v534 = vadd.f32 %v533, %v514
          %v535 = vadd.f32 %v531, %v534
          %536 = vst [vmem:[#allocation2] sm:$0xff] %v535
          %v537 = vld [vmem:[#allocation3] sm:$0xff]
          %v538 = vadd.f32 %v523, %v524
          %v539 = vadd.f32 %v538, %v525
          %v540 = vadd.f32 %v539, %v526
          %v541 = vadd.f32 %v537, %v540
          %542 = vst [vmem:[#allocation3] sm:$0xff] %v541
          %v543 = vld [vmem:[#allocation4] sm:$0xff]
          %v544 = vadd.f32 %v527, %v528
          %v545 = vadd.f32 %v544, %v529
          %v546 = vadd.f32 %v545, %v530
          %v547 = vadd.f32 %v543, %v546
          %548 = vst [vmem:[#allocation4] sm:$0xff] %v547
          %v549 = vld [vmem:[%s398] sm:$0xff]
          %v550 = vld [vmem:[%s398 + $0x8] sm:$0xff]
          %v551 = vld [vmem:[%s398 + $0x10] sm:$0xff]
          %v552 = vld [vmem:[%s398 + $0x18] sm:$0xff]
          %vm553 = vcmp.eq.s32.totalorder %v507, 2
          %vm554 = vcmp.eq.s32.totalorder %v508, 2
          %vm555 = vcmp.eq.s32.totalorder %v509, 2
          %vm556 = vcmp.eq.s32.totalorder %v510, 2
          %v557 = vsel %vm553, 1, 0
          %v558 = vsel %vm554, 1, 0
          %v559 = vsel %vm555, 1, 0
          %v560 = vsel %vm556, 1, 0
          %v561 = vcvt.s32.f32 %v557
          %v562 = vcvt.s32.f32 %v558
          %v563 = vcvt.s32.f32 %v559
          %v564 = vcvt.s32.f32 %v560
          %v565 = vmul.f32 %v549, %v561
          %v566 = vmul.f32 %v550, %v562
          %v567 = vmul.f32 %v551, %v563
          %v568 = vmul.f32 %v552, %v564
          %s569 = scalar_lea.vmem [#allocation2], 8
          %v570 = vld [vmem:[%s569] sm:$0xff]
          %v571 = vadd.f32 %v549, %v550
          %v572 = vadd.f32 %v571, %v551
          %v573 = vadd.f32 %v572, %v552
          %v574 = vadd.f32 %v570, %v573
          %575 = vst [vmem:[%s569] sm:$0xff] %v574
          %s576 = scalar_lea.vmem [#allocation3], 8
          %v577 = vld [vmem:[%s576] sm:$0xff]
          %v578 = vadd.f32 %v561, %v562
          %v579 = vadd.f32 %v578, %v563
          %v580 = vadd.f32 %v579, %v564
          %v581 = vadd.f32 %v577, %v580
          %582 = vst [vmem:[%s576] sm:$0xff] %v581
          %s583 = scalar_lea.vmem [#allocation4], 8
          %v584 = vld [vmem:[%s583] sm:$0xff]
          %v585 = vadd.f32 %v565, %v566
          %v586 = vadd.f32 %v585, %v567
          %v587 = vadd.f32 %v586, %v568
          %v588 = vadd.f32 %v584, %v587
          %589 = vst [vmem:[%s583] sm:$0xff] %v588
          %v590 = vld [vmem:[%s407] sm:$0xff]
          %v591 = vld [vmem:[%s407 + $0x8] sm:$0xff]
          %v592 = vld [vmem:[%s407 + $0x10] sm:$0xff]
          %v593 = vld [vmem:[%s407 + $0x18] sm:$0xff]
          %vm594 = vcmp.eq.s32.totalorder %v507, 3
          %vm595 = vcmp.eq.s32.totalorder %v508, 3
          %vm596 = vcmp.eq.s32.totalorder %v509, 3
          %vm597 = vcmp.eq.s32.totalorder %v510, 3
          %v598 = vsel %vm594, 1, 0
          %v599 = vsel %vm595, 1, 0
          %v600 = vsel %vm596, 1, 0
          %v601 = vsel %vm597, 1, 0
          %v602 = vcvt.s32.f32 %v598
          %v603 = vcvt.s32.f32 %v599
          %v604 = vcvt.s32.f32 %v600
          %v605 = vcvt.s32.f32 %v601
          %v606 = vmul.f32 %v590, %v602
          %v607 = vmul.f32 %v591, %v603
          %v608 = vmul.f32 %v592, %v604
          %v609 = vmul.f32 %v593, %v605
          %s610 = scalar_lea.vmem [#allocation2], 16
          %v611 = vld [vmem:[%s610] sm:$0xff]
          %v612 = vadd.f32 %v590, %v591
          %v613 = vadd.f32 %v612, %v592
          %v614 = vadd.f32 %v613, %v593
          %v615 = vadd.f32 %v611, %v614
          %616 = vst [vmem:[%s610] sm:$0xff] %v615
          %s617 = scalar_lea.vmem [#allocation3], 16
          %v618 = vld [vmem:[%s617] sm:$0xff]
          %v619 = vadd.f32 %v602, %v603
          %v620 = vadd.f32 %v619, %v604
          %v621 = vadd.f32 %v620, %v605
          %v622 = vadd.f32 %v618, %v621
          %623 = vst [vmem:[%s617] sm:$0xff] %v622
          %s624 = scalar_lea.vmem [#allocation4], 16
          %v625 = vld [vmem:[%s624] sm:$0xff]
          %v626 = vadd.f32 %v606, %v607
          %v627 = vadd.f32 %v626, %v608
          %v628 = vadd.f32 %v627, %v609
          %v629 = vadd.f32 %v625, %v628
          %630 = vst [vmem:[%s624] sm:$0xff] %v629
          %v631 = vld [vmem:[%s416] sm:$0xff]
          %v632 = vld [vmem:[%s416 + $0x8] sm:$0xff]
          %v633 = vld [vmem:[%s416 + $0x10] sm:$0xff]
          %v634 = vld [vmem:[%s416 + $0x18] sm:$0xff]
          %vm635 = vcmp.eq.s32.totalorder %v507, 4
          %vm636 = vcmp.eq.s32.totalorder %v508, 4
          %vm637 = vcmp.eq.s32.totalorder %v509, 4
          %vm638 = vcmp.eq.s32.totalorder %v510, 4
          %v639 = vsel %vm635, 1, 0
          %v640 = vsel %vm636, 1, 0
          %v641 = vsel %vm637, 1, 0
          %v642 = vsel %vm638, 1, 0
          %v643 = vcvt.s32.f32 %v639
          %v644 = vcvt.s32.f32 %v640
          %v645 = vcvt.s32.f32 %v641
          %v646 = vcvt.s32.f32 %v642
          %v647 = vmul.f32 %v631, %v643
          %v648 = vmul.f32 %v632, %v644
          %v649 = vmul.f32 %v633, %v645
          %v650 = vmul.f32 %v634, %v646
          %s651 = scalar_lea.vmem [#allocation2], 24
          %v652 = vld [vmem:[%s651] sm:$0xff]
          %v653 = vadd.f32 %v631, %v632
          %v654 = vadd.f32 %v653, %v633
          %v655 = vadd.f32 %v654, %v634
          %v656 = vadd.f32 %v652, %v655
          %657 = vst [vmem:[%s651] sm:$0xff] %v656
          %s658 = scalar_lea.vmem [#allocation3], 24
          %v659 = vld [vmem:[%s658] sm:$0xff]
          %v660 = vadd.f32 %v643, %v644
          %v661 = vadd.f32 %v660, %v645
          %v662 = vadd.f32 %v661, %v646
          %v663 = vadd.f32 %v659, %v662
          %664 = vst [vmem:[%s658] sm:$0xff] %v663
          %s665 = scalar_lea.vmem [#allocation4], 24
          %v666 = vld [vmem:[%s665] sm:$0xff]
          %v667 = vadd.f32 %v647, %v648
          %v668 = vadd.f32 %v667, %v649
          %v669 = vadd.f32 %v668, %v650
          %v670 = vadd.f32 %v666, %v669
          %671 = vst [vmem:[%s665] sm:$0xff] %v670
        $region68: #{tpu_custom_call.1} parent=39 // pred_fallthru
          _
        %p672 = scmp.eq.s32.totalorder %s33, 1
        // Predicated region
        $region69: #{tpu_custom_call.1} parent=39 // pred_check
          %p673 = pneg %p672
        $region70: #{tpu_custom_call.1} parent=39 // pred_check_branch
          %675 = sbr.rel (%p673) target = $region72
        $region71: #{tpu_custom_call.1} parent=39 // pred_region
          %v676 = vld [vmem:[%s380] sm:$0xff]
          %v677 = vld [vmem:[%s380 + $0x8] sm:$0xff]
          %v678 = vld [vmem:[%s380 + $0x10] sm:$0xff]
          %v679 = vld [vmem:[%s380 + $0x18] sm:$0xff]
          %v680 = vlaneseq
          %v681 = vshrl.u32 %v680, 7
          %v682 = vadd.s32 %v681, 8
          %v683 = vadd.s32 %v681, 16
          %v684 = vadd.s32 %v681, 24
          %s685 = smul.u32 %s33, 32
          %v686 = vstv %s685
          %v687 = vadd.s32 %v686, %v681
          %v688 = vadd.s32 %v686, %v682
          %v689 = vadd.s32 %v686, %v683
          %v690 = vadd.s32 %v686, %v684
          %vm691 = vcmp.lt.s32.totalorder %v687, 48
          %vm692 = vcmp.lt.s32.totalorder %v688, 48
          %vm693 = vcmp.lt.s32.totalorder %v689, 48
          %vm694 = vcmp.lt.s32.totalorder %v690, 48
          %v695 = vld [vmem:[%s389] sm:$0xff]
          %v696 = vld [vmem:[%s389 + $0x8] sm:$0xff]
          %v697 = vld [vmem:[%s389 + $0x10] sm:$0xff]
          %v698 = vld [vmem:[%s389 + $0x18] sm:$0xff]
          %vm699 = vcmp.eq.s32.totalorder %v676, 1
          %vm700 = vcmp.eq.s32.totalorder %v677, 1
          %vm701 = vcmp.eq.s32.totalorder %v678, 1
          %vm702 = vcmp.eq.s32.totalorder %v679, 1
          %v703 = vsel %vm691, %v695, 0.0
          %v704 = vsel %vm692, %v696, 0.0
          %v705 = vsel %vm693, %v697, 0.0
          %v706 = vsel %vm694, %v698, 0.0
          %vm707 = vmand %vm699, %vm691
          %vm708 = vmand %vm700, %vm692
          %vm709 = vmand %vm701, %vm693
          %vm710 = vmand %vm702, %vm694
          %v711 = vsel %vm707, 1, 0
          %v712 = vsel %vm708, 1, 0
          %v713 = vsel %vm709, 1, 0
          %v714 = vsel %vm710, 1, 0
          %v715 = vcvt.s32.f32 %v711
          %v716 = vcvt.s32.f32 %v712
          %v717 = vcvt.s32.f32 %v713
          %v718 = vcvt.s32.f32 %v714
          %v719 = vmul.f32 %v703, %v715
          %v720 = vmul.f32 %v704, %v716
          %v721 = vmul.f32 %v705, %v717
          %v722 = vmul.f32 %v706, %v718
          %v723 = vld [vmem:[#allocation2] sm:$0xff]
          %v724 = vadd.f32 %v703, %v704
          %v725 = vadd.f32 %v724, %v705
          %v726 = vadd.f32 %v725, %v706
          %v727 = vadd.f32 %v723, %v726
          %728 = vst [vmem:[#allocation2] sm:$0xff] %v727
          %v729 = vld [vmem:[#allocation3] sm:$0xff]
          %v730 = vadd.f32 %v715, %v716
          %v731 = vadd.f32 %v730, %v717
          %v732 = vadd.f32 %v731, %v718
          %v733 = vadd.f32 %v729, %v732
          %734 = vst [vmem:[#allocation3] sm:$0xff] %v733
          %v735 = vld [vmem:[#allocation4] sm:$0xff]
          %v736 = vadd.f32 %v719, %v720
          %v737 = vadd.f32 %v736, %v721
          %v738 = vadd.f32 %v737, %v722
          %v739 = vadd.f32 %v735, %v738
          %740 = vst [vmem:[#allocation4] sm:$0xff] %v739
          %v741 = vld [vmem:[%s398] sm:$0xff]
          %v742 = vld [vmem:[%s398 + $0x8] sm:$0xff]
          %v743 = vld [vmem:[%s398 + $0x10] sm:$0xff]
          %v744 = vld [vmem:[%s398 + $0x18] sm:$0xff]
          %vm745 = vcmp.eq.s32.totalorder %v676, 2
          %vm746 = vcmp.eq.s32.totalorder %v677, 2
          %vm747 = vcmp.eq.s32.totalorder %v678, 2
          %vm748 = vcmp.eq.s32.totalorder %v679, 2
          %v749 = vsel %vm691, %v741, 0.0
          %v750 = vsel %vm692, %v742, 0.0
          %v751 = vsel %vm693, %v743, 0.0
          %v752 = vsel %vm694, %v744, 0.0
          %vm753 = vmand %vm745, %vm691
          %vm754 = vmand %vm746, %vm692
          %vm755 = vmand %vm747, %vm693
          %vm756 = vmand %vm748, %vm694
          %v757 = vsel %vm753, 1, 0
          %v758 = vsel %vm754, 1, 0
          %v759 = vsel %vm755, 1, 0
          %v760 = vsel %vm756, 1, 0
          %v761 = vcvt.s32.f32 %v757
          %v762 = vcvt.s32.f32 %v758
          %v763 = vcvt.s32.f32 %v759
          %v764 = vcvt.s32.f32 %v760
          %v765 = vmul.f32 %v749, %v761
          %v766 = vmul.f32 %v750, %v762
          %v767 = vmul.f32 %v751, %v763
          %v768 = vmul.f32 %v752, %v764
          %s769 = scalar_lea.vmem [#allocation2], 8
          %v770 = vld [vmem:[%s769] sm:$0xff]
          %v771 = vadd.f32 %v749, %v750
          %v772 = vadd.f32 %v771, %v751
          %v773 = vadd.f32 %v772, %v752
          %v774 = vadd.f32 %v770, %v773
          %775 = vst [vmem:[%s769] sm:$0xff] %v774
          %s776 = scalar_lea.vmem [#allocation3], 8
          %v777 = vld [vmem:[%s776] sm:$0xff]
          %v778 = vadd.f32 %v761, %v762
          %v779 = vadd.f32 %v778, %v763
          %v780 = vadd.f32 %v779, %v764
          %v781 = vadd.f32 %v777, %v780
          %782 = vst [vmem:[%s776] sm:$0xff] %v781
          %s783 = scalar_lea.vmem [#allocation4], 8
          %v784 = vld [vmem:[%s783] sm:$0xff]
          %v785 = vadd.f32 %v765, %v766
          %v786 = vadd.f32 %v785, %v767
          %v787 = vadd.f32 %v786, %v768
          %v788 = vadd.f32 %v784, %v787
          %789 = vst [vmem:[%s783] sm:$0xff] %v788
          %v790 = vld [vmem:[%s407] sm:$0xff]
          %v791 = vld [vmem:[%s407 + $0x8] sm:$0xff]
          %v792 = vld [vmem:[%s407 + $0x10] sm:$0xff]
          %v793 = vld [vmem:[%s407 + $0x18] sm:$0xff]
          %vm794 = vcmp.eq.s32.totalorder %v676, 3
          %vm795 = vcmp.eq.s32.totalorder %v677, 3
          %vm796 = vcmp.eq.s32.totalorder %v678, 3
          %vm797 = vcmp.eq.s32.totalorder %v679, 3
          %v798 = vsel %vm691, %v790, 0.0
          %v799 = vsel %vm692, %v791, 0.0
          %v800 = vsel %vm693, %v792, 0.0
          %v801 = vsel %vm694, %v793, 0.0
          %vm802 = vmand %vm794, %vm691
          %vm803 = vmand %vm795, %vm692
          %vm804 = vmand %vm796, %vm693
          %vm805 = vmand %vm797, %vm694
          %v806 = vsel %vm802, 1, 0
          %v807 = vsel %vm803, 1, 0
          %v808 = vsel %vm804, 1, 0
          %v809 = vsel %vm805, 1, 0
          %v810 = vcvt.s32.f32 %v806
          %v811 = vcvt.s32.f32 %v807
          %v812 = vcvt.s32.f32 %v808
          %v813 = vcvt.s32.f32 %v809
          %v814 = vmul.f32 %v798, %v810
          %v815 = vmul.f32 %v799, %v811
          %v816 = vmul.f32 %v800, %v812
          %v817 = vmul.f32 %v801, %v813
          %s818 = scalar_lea.vmem [#allocation2], 16
          %v819 = vld [vmem:[%s818] sm:$0xff]
          %v820 = vadd.f32 %v798, %v799
          %v821 = vadd.f32 %v820, %v800
          %v822 = vadd.f32 %v821, %v801
          %v823 = vadd.f32 %v819, %v822
          %824 = vst [vmem:[%s818] sm:$0xff] %v823
          %s825 = scalar_lea.vmem [#allocation3], 16
          %v826 = vld [vmem:[%s825] sm:$0xff]
          %v827 = vadd.f32 %v810, %v811
          %v828 = vadd.f32 %v827, %v812
          %v829 = vadd.f32 %v828, %v813
          %v830 = vadd.f32 %v826, %v829
          %831 = vst [vmem:[%s825] sm:$0xff] %v830
          %s832 = scalar_lea.vmem [#allocation4], 16
          %v833 = vld [vmem:[%s832] sm:$0xff]
          %v834 = vadd.f32 %v814, %v815
          %v835 = vadd.f32 %v834, %v816
          %v836 = vadd.f32 %v835, %v817
          %v837 = vadd.f32 %v833, %v836
          %838 = vst [vmem:[%s832] sm:$0xff] %v837
          %v839 = vld [vmem:[%s416] sm:$0xff]
          %v840 = vld [vmem:[%s416 + $0x8] sm:$0xff]
          %v841 = vld [vmem:[%s416 + $0x10] sm:$0xff]
          %v842 = vld [vmem:[%s416 + $0x18] sm:$0xff]
          %vm843 = vcmp.eq.s32.totalorder %v676, 4
          %vm844 = vcmp.eq.s32.totalorder %v677, 4
          %vm845 = vcmp.eq.s32.totalorder %v678, 4
          %vm846 = vcmp.eq.s32.totalorder %v679, 4
          %v847 = vsel %vm691, %v839, 0.0
          %v848 = vsel %vm692, %v840, 0.0
          %v849 = vsel %vm693, %v841, 0.0
          %v850 = vsel %vm694, %v842, 0.0
          %vm851 = vmand %vm843, %vm691
          %vm852 = vmand %vm844, %vm692
          %vm853 = vmand %vm845, %vm693
          %vm854 = vmand %vm846, %vm694
          %v855 = vsel %vm851, 1, 0
          %v856 = vsel %vm852, 1, 0
          %v857 = vsel %vm853, 1, 0
          %v858 = vsel %vm854, 1, 0
          %v859 = vcvt.s32.f32 %v855
          %v860 = vcvt.s32.f32 %v856
          %v861 = vcvt.s32.f32 %v857
          %v862 = vcvt.s32.f32 %v858
          %v863 = vmul.f32 %v847, %v859
          %v864 = vmul.f32 %v848, %v860
          %v865 = vmul.f32 %v849, %v861
          %v866 = vmul.f32 %v850, %v862
          %s867 = scalar_lea.vmem [#allocation2], 24
          %v868 = vld [vmem:[%s867] sm:$0xff]
          %v869 = vadd.f32 %v847, %v848
          %v870 = vadd.f32 %v869, %v849
          %v871 = vadd.f32 %v870, %v850
          %v872 = vadd.f32 %v868, %v871
          %873 = vst [vmem:[%s867] sm:$0xff] %v872
          %s874 = scalar_lea.vmem [#allocation3], 24
          %v875 = vld [vmem:[%s874] sm:$0xff]
          %v876 = vadd.f32 %v859, %v860
          %v877 = vadd.f32 %v876, %v861
          %v878 = vadd.f32 %v877, %v862
          %v879 = vadd.f32 %v875, %v878
          %880 = vst [vmem:[%s874] sm:$0xff] %v879
          %s881 = scalar_lea.vmem [#allocation4], 24
          %v882 = vld [vmem:[%s881] sm:$0xff]
          %v883 = vadd.f32 %v863, %v864
          %v884 = vadd.f32 %v883, %v865
          %v885 = vadd.f32 %v884, %v866
          %v886 = vadd.f32 %v882, %v885
          %887 = vst [vmem:[%s881] sm:$0xff] %v886
          %v888 = vlaneseq
          %v889 = vand.u32 %v888, 127
          %v890 = vld [vmem:[#allocation2] sm:$0xff]
          %891 = vadd.xlane.f32.xlu0 %v890
          %v892 = vpop.xlane.xlu0 %891
          %v893 = vrot.slane %v892, 4
          %v894 = vadd.f32 %v892, %v893
          %v895 = vrot.slane %v894, 2
          %v896 = vadd.f32 %v894, %v895
          %v897 = vrot.slane %v896, 1
          %v898 = vadd.f32 %v896, %v897
          %s899 = vtos %v898
          %v900 = vld [vmem:[#allocation3] sm:$0xff]
          %901 = vadd.xlane.f32.xlu0 %v900
          %v902 = vpop.xlane.xlu0 %901
          %v903 = vrot.slane %v902, 4
          %v904 = vadd.f32 %v902, %v903
          %v905 = vrot.slane %v904, 2
          %v906 = vadd.f32 %v904, %v905
          %v907 = vrot.slane %v906, 1
          %v908 = vadd.f32 %v906, %v907
          %s909 = vtos %v908
          %v910 = vld [vmem:[#allocation4] sm:$0xff]
          %911 = vadd.xlane.f32.xlu0 %v910
          %v912 = vpop.xlane.xlu0 %911
          %v913 = vrot.slane %v912, 4
          %v914 = vadd.f32 %v912, %v913
          %v915 = vrot.slane %v914, 2
          %v916 = vadd.f32 %v914, %v915
          %v917 = vrot.slane %v916, 1
          %v918 = vadd.f32 %v916, %v917
          %s919 = vtos %v918
          %s920 = smul.f32 %s919, 2.0
          %s921 = sadd.f32 %s920, 1e-06
          %s922 = sadd.f32 %s909, %s899
          %s923 = sadd.f32 %s922, 1e-06
          %v924 = vstv %s923
          %v925 = vrcp.pop %v924
          %s926 = vtos %v925
          %s927 = smul.f32 %s921, %s926
          %vm928 = vcmp.eq.s32.totalorder %v889, 0
          %s929 = ssub.f32 1.0, %s927
          %v930 = vstv %s929
          %v931 = vsel %vm928, %v930, 0.0
          %v932 = vld [vmem:[%s769] sm:$0xff]
          %933 = vadd.xlane.f32.xlu0 %v932
          %v934 = vpop.xlane.xlu0 %933
          %v935 = vrot.slane %v934, 4
          %v936 = vadd.f32 %v934, %v935
          %v937 = vrot.slane %v936, 2
          %v938 = vadd.f32 %v936, %v937
          %v939 = vrot.slane %v938, 1
          %v940 = vadd.f32 %v938, %v939
          %s941 = vtos %v940
          %v942 = vld [vmem:[%s776] sm:$0xff]
          %943 = vadd.xlane.f32.xlu0 %v942
          %v944 = vpop.xlane.xlu0 %943
          %v945 = vrot.slane %v944, 4
          %v946 = vadd.f32 %v944, %v945
          %v947 = vrot.slane %v946, 2
          %v948 = vadd.f32 %v946, %v947
          %v949 = vrot.slane %v948, 1
          %v950 = vadd.f32 %v948, %v949
          %s951 = vtos %v950
          %v952 = vld [vmem:[%s783] sm:$0xff]
          %953 = vadd.xlane.f32.xlu0 %v952
          %v954 = vpop.xlane.xlu0 %953
          %v955 = vrot.slane %v954, 4
          %v956 = vadd.f32 %v954, %v955
          %v957 = vrot.slane %v956, 2
          %v958 = vadd.f32 %v956, %v957
          %v959 = vrot.slane %v958, 1
          %v960 = vadd.f32 %v958, %v959
          %s961 = vtos %v960
          %s962 = smul.f32 %s961, 2.0
          %s963 = sadd.f32 %s962, 1e-06
          %s964 = sadd.f32 %s951, %s941
          %s965 = sadd.f32 %s964, 1e-06
          %v966 = vstv %s965
          %v967 = vrcp.pop %v966
          %s968 = vtos %v967
          %s969 = smul.f32 %s963, %s968
          %vm970 = vcmp.eq.s32.totalorder %v889, 1
          %s971 = ssub.f32 1.0, %s969
          %v972 = vstv %s971
          %v973 = vsel %vm970, %v972, %v931
          %v974 = vld [vmem:[%s818] sm:$0xff]
          %975 = vadd.xlane.f32.xlu0 %v974
          %v976 = vpop.xlane.xlu0 %975
          %v977 = vrot.slane %v976, 4
          %v978 = vadd.f32 %v976, %v977
          %v979 = vrot.slane %v978, 2
          %v980 = vadd.f32 %v978, %v979
          %v981 = vrot.slane %v980, 1
          %v982 = vadd.f32 %v980, %v981
          %s983 = vtos %v982
          %v984 = vld [vmem:[%s825] sm:$0xff]
          %985 = vadd.xlane.f32.xlu0 %v984
          %v986 = vpop.xlane.xlu0 %985
          %v987 = vrot.slane %v986, 4
          %v988 = vadd.f32 %v986, %v987
          %v989 = vrot.slane %v988, 2
          %v990 = vadd.f32 %v988, %v989
          %v991 = vrot.slane %v990, 1
          %v992 = vadd.f32 %v990, %v991
          %s993 = vtos %v992
          %v994 = vld [vmem:[%s832] sm:$0xff]
          %995 = vadd.xlane.f32.xlu0 %v994
          %v996 = vpop.xlane.xlu0 %995
          %v997 = vrot.slane %v996, 4
          %v998 = vadd.f32 %v996, %v997
          %v999 = vrot.slane %v998, 2
          %v1000 = vadd.f32 %v998, %v999
          %v1001 = vrot.slane %v1000, 1
          %v1002 = vadd.f32 %v1000, %v1001
          %s1003 = vtos %v1002
          %s1004 = smul.f32 %s1003, 2.0
          %s1005 = sadd.f32 %s1004, 1e-06
          %s1006 = sadd.f32 %s993, %s983
          %s1007 = sadd.f32 %s1006, 1e-06
          %v1008 = vstv %s1007
          %v1009 = vrcp.pop %v1008
          %s1010 = vtos %v1009
          %s1011 = smul.f32 %s1005, %s1010
          %vm1012 = vcmp.eq.s32.totalorder %v889, 2
          %s1013 = ssub.f32 1.0, %s1011
          %v1014 = vstv %s1013
          %v1015 = vsel %vm1012, %v1014, %v973
          %v1016 = vld [vmem:[%s867] sm:$0xff]
          %1017 = vadd.xlane.f32.xlu0 %v1016
          %v1018 = vpop.xlane.xlu0 %1017
          %v1019 = vrot.slane %v1018, 4
          %v1020 = vadd.f32 %v1018, %v1019
          %v1021 = vrot.slane %v1020, 2
          %v1022 = vadd.f32 %v1020, %v1021
          %v1023 = vrot.slane %v1022, 1
          %v1024 = vadd.f32 %v1022, %v1023
          %s1025 = vtos %v1024
          %v1026 = vld [vmem:[%s874] sm:$0xff]
          %1027 = vadd.xlane.f32.xlu0 %v1026
          %v1028 = vpop.xlane.xlu0 %1027
          %v1029 = vrot.slane %v1028, 4
          %v1030 = vadd.f32 %v1028, %v1029
          %v1031 = vrot.slane %v1030, 2
          %v1032 = vadd.f32 %v1030, %v1031
          %v1033 = vrot.slane %v1032, 1
          %v1034 = vadd.f32 %v1032, %v1033
          %s1035 = vtos %v1034
          %v1036 = vld [vmem:[%s881] sm:$0xff]
          %1037 = vadd.xlane.f32.xlu0 %v1036
          %v1038 = vpop.xlane.xlu0 %1037
          %v1039 = vrot.slane %v1038, 4
          %v1040 = vadd.f32 %v1038, %v1039
          %v1041 = vrot.slane %v1040, 2
          %v1042 = vadd.f32 %v1040, %v1041
          %v1043 = vrot.slane %v1042, 1
          %v1044 = vadd.f32 %v1042, %v1043
          %s1045 = vtos %v1044
          %s1046 = smul.f32 %s1045, 2.0
          %s1047 = sadd.f32 %s1046, 1e-06
          %s1048 = sadd.f32 %s1035, %s1025
          %s1049 = sadd.f32 %s1048, 1e-06
          %v1050 = vstv %s1049
          %v1051 = vrcp.pop %v1050
          %s1052 = vtos %v1051
          %s1053 = smul.f32 %s1047, %s1052
          %vm1054 = vcmp.eq.s32.totalorder %v889, 3
          %s1055 = ssub.f32 1.0, %s1053
          %v1056 = vstv %s1055
          %v1057 = vsel %vm1054, %v1056, %v1015
          %vm1058 = vcmask 24576
          %1059 = vst.msk [vmem:[%s461] sm:$0x1] %vm1058, %v1057
        $region72: #{tpu_custom_call.1} parent=39 // pred_fallthru
          _
        %s1060 = sand.u32 %s188, 1
        %s1061 = scalar_lea.sflag [#allocation7], %s1060
        %s1062 = sand.u32 %s188, 1
        %s1063 = scalar_lea.vmem [#allocation14], %s1062
        // Predicated region
        $region73: #{tpu_custom_call.1} parent=39 // pred_check
          %p1064 = pneg %p198
        $region74: #{tpu_custom_call.1} parent=39 // pred_check_branch
          %1066 = sbr.rel (%p1064) target = $region76
        $region75: #{tpu_custom_call.1} parent=39 // pred_region
          %s1068 = ssub.s32 16, 16
          %1069 = vsyncadd %s1061, %s1068
          %s1070 = smul.addr %s32, 16
          %s1071 = scalar_lea.hbm %s5, %s1070
          %s1073 = sshll.u32 %s1063, 4
          %s1074 = int_to_ptr.vmem [resolvable:$true] %s1073
          %1076 = dma.vmem_to_hbm [thread:$0]  %s1074, 16, %s1071, %s1061
        $region76: #{tpu_custom_call.1} parent=39 // pred_fallthru
          _
      $region40: #{tpu_custom_call.1} parent=5 // pred_fallthru
        _
      %p1077 = scmp.le.s32.totalorder 2, %s23
      // Predicated region
      $region77: #{tpu_custom_call.1} parent=5 // pred_check
        %p1078 = pneg %p1077
      $region78: #{tpu_custom_call.1} parent=5 // pred_check_branch
        %1080 = sbr.rel (%p1078) target = $region80
      $region79: #{tpu_custom_call.1} parent=5 // pred_region
        %s1081 = ssub.s32 %s23, 2
        // Predicated region
        $region81: #{tpu_custom_call.1} parent=79 // pred_check
          %p1082 = pneg %p204
        $region82: #{tpu_custom_call.1} parent=79 // pred_check_branch
          %1084 = sbr.rel (%p1082) target = $region84
        $region83: #{tpu_custom_call.1} parent=79 // pred_region
          %s1085 = sand.u32 %s189, 1
          %s1086 = scalar_lea.sflag [#allocation7], %s1085
          %s1087 = sand.u32 %s189, 1
          %s1088 = scalar_lea.vmem [#allocation14], %s1087
          %1089 = dma.done %s1086, 16
        $region84: #{tpu_custom_call.1} parent=79 // pred_fallthru
          _
      $region80: #{tpu_custom_call.1} parent=5 // pred_fallthru
        _
    $region6: #{tpu_custom_call.1} parent=1 // loop_footer
      %s27 = sadd.s32 1, %s23
    $region7: #{tpu_custom_call.1} parent=1 // loop_footer_branch
      %22 = sbr.rel target = $region3
    $region8: #{tpu_custom_call.1} parent=1 // loop_exit
      _
    %1090 = vsyncpa [#allocation6], 1
    %s1091 = scalar_lea.sflag [#allocation6], 1
    %1092 = vsyncpa %s1091, 1
    %1093 = vsyncpa [#allocation9], 1
    %s1094 = scalar_lea.sflag [#allocation9], 1
    %1095 = vsyncpa %s1094, 1
    %1096 = vsyncpa [#allocation12], 1
    %s1097 = scalar_lea.sflag [#allocation12], 1
    %1098 = vsyncpa %s1097, 1
    %1099 = vsyncpa [#allocation7], 1
    %s1100 = scalar_lea.sflag [#allocation7], 1
    %1101 = vsyncpa %s1100, 1

</llo_original>
